<compile_context>
chip_gen: v7x
topology: tpu7x:2x2x1
jax: 0.10.0
libtpu: 0.0.40
codegen_flags: <defaults>
</compile_context>

<pallas_src>
import math

import jax
import jax.numpy as jnp
from jax.experimental import pallas as pl
from jax.experimental.pallas import tpu as pltpu

EPS = 1e-5  # PyTorch nn.LayerNorm default
_TASK_OUT = {'expr': 8, 'va': 2, 'au': 12}


# ----------------------------- shared math helpers -----------------------------

def _layer_norm(x, g, b):
    """LayerNorm over the last axis (biased variance, matches PyTorch)."""
    mu = jnp.mean(x, axis=-1, keepdims=True)
    var = jnp.mean((x - mu) ** 2, axis=-1, keepdims=True)
    return (x - mu) * jax.lax.rsqrt(var + EPS) * g + b


def _gelu_exact(x):
    """Exact (erf-based) GELU, matching PyTorch activation='gelu'."""
    return 0.5 * x * (1.0 + jax.lax.erf(x * 0.7071067811865476))


# --------------------------------- kernel ---------------------------------------

def _make_fused_kernel(num_heads, task):
    H = num_heads

    def kernel(x_ref, in_w_ref, in_b_ref,
               wqkv_ref, wo_ref, w1_ref, w2_ref, small_ref, b1_ref,
               ng_ref, nb_ref, cg_ref, cb_ref, cw_ref, cbias_ref,
               out_ref, act_ref):
        """grid = (batch_tiles, num_layers); act_ref carries the activation
        across the layer axis; per-layer weight slabs stream layer by layer."""
        bt, S, in_dim = x_ref.shape
        D = act_ref.shape[2]
        N = bt * S
        hd = D // H
        scale = 1.0 / math.sqrt(hd)
        bf16 = jnp.bfloat16

        layer = pl.program_id(1)

        # Layer 0: project the raw (bf16) input tile into the resident scratch.
        @pl.when(layer == 0)
        def _():
            xin = x_ref[...].reshape(N, in_dim)
            y = jnp.dot(xin, in_w_ref[...], preferred_element_type=jnp.float32)
            act_ref[...] = (y + in_b_ref[...]).reshape(bt, S, D)

        x = act_ref[...].reshape(N, D)          # (N, D) f32 residual stream
        xb = x.astype(bf16)

        sm = small_ref[...]                     # (9, D) f32 packed small tensors
        bq, bk, bv, bo = sm[0:1], sm[1:2], sm[2:3], sm[3:4]
        ln1_g, ln1_b = sm[4:5], sm[5:6]
        b2 = sm[6:7]
        ln2_g, ln2_b = sm[7:8], sm[8:9]

        # ---- fused QKV projection: one lane-dense (N, D) @ (D, 3D) MXU matmul ----
        qkv = jnp.dot(xb, wqkv_ref[...], preferred_element_type=jnp.float32)
        q = qkv[:, 0:D] + bq
        k = qkv[:, D:2 * D] + bk
        v = qkv[:, 2 * D:3 * D] + bv

        # ---- per-head attention (scores/context only; H is small & static) ----
        ctx_parts = []
        for h in range(H):
            sl = slice(h * hd, (h + 1) * hd)
            qh = q[:, sl].reshape(bt, S, hd).astype(bf16)
            kh = k[:, sl].reshape(bt, S, hd).astype(bf16)
            vh = v[:, sl].reshape(bt, S, hd).astype(bf16)

            s = jnp.einsum('bqd,bkd->bqk', qh, kh,
                           preferred_element_type=jnp.float32) * scale
            s = s - jnp.max(s, axis=-1, keepdims=True)
            p = jnp.exp(s)
            p = p * pl.reciprocal(jnp.sum(p, axis=-1, keepdims=True), approx=True)

            ctxh = jnp.einsum('bqk,bkd->bqd', p.astype(bf16), vh,
                              preferred_element_type=jnp.float32)   # (bt, S, hd)
            ctx_parts.append(ctxh.reshape(N, hd))

        # Re-merge heads and do ONE lane-dense output projection.
        ctx = jnp.concatenate(ctx_parts, axis=-1)                    # (N, D)
        attn = jnp.dot(ctx.astype(bf16), wo_ref[...],
                       preferred_element_type=jnp.float32) + bo

        # ---- post-norm residual blocks (norm_first=False default) ----
        h1 = _layer_norm(x + attn, ln1_g, ln1_b)
        ffh = _gelu_exact(jnp.dot(h1.astype(bf16), w1_ref[...],
                                  preferred_element_type=jnp.float32) + b1_ref[...])
        ffo = jnp.dot(ffh.astype(bf16), w2_ref[...],
                      preferred_element_type=jnp.float32) + b2
        h2 = _layer_norm(h1 + ffo, ln2_g, ln2_b)

        h2_3d = h2.reshape(bt, S, D)
        act_ref[...] = h2_3d

        # ---- fused classifier head on the last layer, last token only ----
        @pl.when(layer == pl.num_programs(1) - 1)
        def _():
            last = h2_3d[:, S - 1, :]                                 # (bt, D)
            z = _layer_norm(last, ng_ref[...], nb_ref[...])           # self.norm
            z = _layer_norm(z, cg_ref[...], cb_ref[...])              # classifier LN
            o = (jnp.dot(z, cw_ref[...], preferred_element_type=jnp.float32)
                 + cbias_ref[...])
            if task == 'va':
                o = jnp.tanh(o)
            elif task == 'au':
                o = jax.nn.sigmoid(o)
            out_ref[...] = o

    return kernel


# ------------------------------ sizing helpers ------------------------------------

def _vmem_limit_bytes():
    """Per-generation VMEM limit (v5e/v6e ~100 MiB, v7x ~56 MiB), with fallback."""
    phys = 64 << 20
    try:
        info = pltpu.get_tpu_info()
        cap = getattr(info, 'vmem_capacity_bytes', None)
        if cap:
            phys = int(cap)
    except Exception:
        pass
    return max(min(phys - (8 << 20), 100 << 20), 32 << 20)


def _min_batch_tiles():
    """Prefer >=2 batch tiles on dual-TensorCore chips (v7x) so 'parallel' helps."""
    try:
        kind = jax.devices()[0].device_kind.lower()
        if 'v7' in kind:
            return 2
    except Exception:
        pass
    return 1


def _pick_bt(B, S, in_dim, D, FF, n_out, budget, min_tiles):
    """Largest batch tile (multiple of 8, divisor of B) whose VMEM footprint fits."""
    if B <= 8 or B % 8 != 0:
        return B
    cands = sorted([m for m in range(8, B + 1, 8) if B % m == 0], reverse=True)
    if min_tiles > 1:
        split = [c for c in cands if B // c >= min_tiles]
        if split:
            cands = split
    per_layer = 2 * (3 * D * D + D * D + 2 * D * FF) + 4 * (9 * D + FF)
    fixed = 2 * 2 * in_dim * D + 4 * 2 * (6 * D + D * n_out + 2 * n_out)
    for bt in cands:
        need = (4 * bt * S * D               # f32 activation scratch
                + 2 * 2 * bt * S * in_dim    # bf16 input block, double-buffered
                + 2 * 4 * bt * n_out         # output block
                + 2 * per_layer              # double-buffered layer weights
                + fixed)
        if need <= budget:
            return bt
    return cands[-1]


# ------------------------------ pallas wrapper ------------------------------------

def forward(params, x, num_heads, task):
    B0, S, in_dim = x.shape
    D = params['in_w'].shape[1]
    num_layers = params['wqkv'].shape[0]
    FF = params['w1'].shape[2]
    n_out = _TASK_OUT[task]

    # x is only ever an MXU operand -> bf16 on the host (halves input DMA/VMEM).
    x = x.astype(jnp.bfloat16)
    # Keep the activation scratch bounded for ragged batches: pad to multiple of 8.
    if B0 > 8 and B0 % 8 != 0:
        x = jnp.pad(x, ((0, (-B0) % 8), (0, 0), (0, 0)))
    B = x.shape[0]

    vmem_limit = _vmem_limit_bytes()
    bt = _pick_bt(B, S, in_dim, D, FF, n_out, vmem_limit, _min_batch_tiles())
    grid = (B // bt, num_layers)

    def resident(dims):
        nd = len(dims)
        return pl.BlockSpec(tuple(dims), lambda b, l: (0,) * nd)

    def per_layer(dims):
        nd = len(dims)
        return pl.BlockSpec((None,) + tuple(dims), lambda b, l: (l,) + (0,) * nd)

    out = pl.pallas_call(
        _make_fused_kernel(num_heads, task),
        out_shape=jax.ShapeDtypeStruct((B, n_out), jnp.float32),
        grid_spec=pltpu.PrefetchScalarGridSpec(
            num_scalar_prefetch=0,
            grid=grid,
            in_specs=[
                pl.BlockSpec((bt, S, in_dim), lambda b, l: (b, 0, 0)),  # x (bf16)
                resident((in_dim, D)),          # in_w   (bf16)
                resident((1, D)),               # in_b
                per_layer((D, 3 * D)),          # wqkv   (bf16)
                per_layer((D, D)),              # wo     (bf16)
                per_layer((D, FF)),             # w1     (bf16)
                per_layer((FF, D)),             # w2     (bf16)
                per_layer((9, D)),              # packed small per-layer tensors
                per_layer((1, FF)),             # b1
                resident((1, D)),               # norm_g
                resident((1, D)),               # norm_b
                resident((1, D)),               # cls_ln_g
                resident((1, D)),               # cls_ln_b
                resident((D, n_out)),           # cls_w
                resident((1, n_out)),           # cls_b
            ],
            out_specs=pl.BlockSpec((bt, n_out), lambda b, l: (b, 0)),
            scratch_shapes=[pltpu.VMEM((bt, S, D), jnp.float32)],
        ),
        compiler_params=pltpu.CompilerParams(
            dimension_semantics=("parallel", "arbitrary"),
            vmem_limit_bytes=vmem_limit,
        ),
    )(x, params['in_w'], params['in_b'],
      params['wqkv'], params['wo'], params['w1'], params['w2'],
      params['small'], params['b1'],
      params['norm_g'], params['norm_b'],
      params['cls_ln_g'], params['cls_ln_b'],
      params['cls_w'], params['cls_b'])

    return out[:B0]


# ----------------------------- parameter building --------------------------------

def init_params(key, input_dim, model_dim, num_heads, num_layers, task):
    """Random parameters in the layout the kernel expects.

    Mapping from torch: Linear.weight (out,in) stored transposed (in,out); the
    in_proj_weight becomes one fused (D, 3D) slab per layer; small per-layer
    vectors packed as rows [bq,bk,bv,bo,ln1_g,ln1_b,b2,ln2_g,ln2_b] of (L,9,D).
    MXU operands pre-cast to bf16.
    """
    D, H = model_dim, num_heads
    assert D % H == 0
    FF = 4 * D
    n_out = _TASK_OUT[task]
    keys = iter(jax.random.split(key, 12 * num_layers + 8))

    def w(shape, scale=0.02):
        return scale * jax.random.normal(next(keys), shape, dtype=jnp.float32)

    wqkv, wo, w1, w2, small, b1 = [], [], [], [], [], []
    for _ in range(num_layers):
        wqkv.append(w((D, 3 * D)))
        wo.append(w((D, D)))
        w1.append(w((D, FF)))
        w2.append(w((FF, D)))
        rows = [w((D,)), w((D,)), w((D,)), w((D,)),                       # bq bk bv bo
                jnp.ones((D,), jnp.float32), jnp.zeros((D,), jnp.float32),  # ln1 g/b
                w((D,)),                                                    # b2
                jnp.ones((D,), jnp.float32), jnp.zeros((D,), jnp.float32)]  # ln2 g/b
        small.append(jnp.stack(rows, axis=0))                               # (9, D)
        b1.append(w((FF,)).reshape(1, FF))

    params = {
        'wqkv': jnp.stack(wqkv).astype(jnp.bfloat16),
        'wo': jnp.stack(wo).astype(jnp.bfloat16),
        'w1': jnp.stack(w1).astype(jnp.bfloat16),
        'w2': jnp.stack(w2).astype(jnp.bfloat16),
        'small': jnp.stack(small),
        'b1': jnp.stack(b1),
        'in_w': w((input_dim, D)).astype(jnp.bfloat16),
        'in_b': w((D,)).reshape(1, D),
        'norm_g': jnp.ones((1, D), jnp.float32),
        'norm_b': jnp.zeros((1, D), jnp.float32),
        'cls_ln_g': jnp.ones((1, D), jnp.float32),
        'cls_ln_b': jnp.zeros((1, D), jnp.float32),
        'cls_w': w((D, n_out)),
        'cls_b': jnp.zeros((1, n_out), jnp.float32),
    }
    return params


# ------------------------------- pure-JAX reference -------------------------------

def reference_forward(p, x, num_heads, task):
    B, S, in_dim = x.shape
    D = p['in_w'].shape[1]
    H = num_heads
    hd = D // H
    L = p['wqkv'].shape[0]
    f32 = jnp.float32

    h = x.reshape(B * S, in_dim).astype(f32) @ p['in_w'].astype(f32) + p['in_b']
    for l in range(L):
        sm = p['small'][l]
        bq, bk, bv, bo = sm[0], sm[1], sm[2], sm[3]
        ln1_g, ln1_b, b2, ln2_g, ln2_b = sm[4], sm[5], sm[6], sm[7], sm[8]

        qkv = h @ p['wqkv'][l].astype(f32)
        q = qkv[:, :D] + bq
        k = qkv[:, D:2 * D] + bk
        v = qkv[:, 2 * D:] + bv

        parts = []
        for hh in range(H):
            sl = slice(hh * hd, (hh + 1) * hd)
            qh = q[:, sl].reshape(B, S, hd)
            kh = k[:, sl].reshape(B, S, hd)
            vh = v[:, sl].reshape(B, S, hd)
            s = jnp.einsum('bqd,bkd->bqk', qh, kh) / math.sqrt(hd)
            pm = jax.nn.softmax(s, axis=-1)
            parts.append(jnp.einsum('bqk,bkd->bqd', pm, vh).reshape(B * S, hd))
        ctx = jnp.concatenate(parts, axis=-1)
        attn = ctx @ p['wo'][l].astype(f32) + bo

        h1 = _layer_norm(h + attn, ln1_g, ln1_b)
        ffh = _gelu_exact(h1 @ p['w1'][l].astype(f32) + p['b1'][l])
        ffo = ffh @ p['w2'][l].astype(f32) + b2
        h = _layer_norm(h1 + ffo, ln2_g, ln2_b)

    last = h.reshape(B, S, D)[:, -1]
    z = _layer_norm(last, p['norm_g'], p['norm_b'])
    z = _layer_norm(z, p['cls_ln_g'], p['cls_ln_b'])
    out = z @ p['cls_w'] + p['cls_b']
    if task == 'va':
        out = jnp.tanh(out)
    elif task == 'au':
        out = jax.nn.sigmoid(out)
    return out


# ------------------------------------ main ----------------------------------------

if __name__ == "__main__":
    # Small shapes consistent with the module's forward: x is (batch, seq, input_dim).
    B, S = 2, 8
    input_dim, model_dim, num_heads, num_layers = 64, 32, 4, 2
    task = 'expr'   # -> 8 output classes
    # TODO(synk): dropout layers are identity here (inference mode only).

    key = jax.random.PRNGKey(0)
    kp, kx = jax.random.split(key)
    params = init_params(kp, input_dim, model_dim, num_heads, num_layers, task)
    x = jax.random.normal(kx, (B, S, input_dim), dtype=jnp.float32)

    out = forward(params, x, num_heads, task)
    out = jax.block_until_ready(out)

    assert out.shape == (B, _TASK_OUT[task]), out.shape
    assert bool(jnp.all(jnp.isfinite(out)))

    # Tolerance check vs a pure-JAX reference (bf16 matmul operands in the kernel).
    ref = reference_forward(params, x, num_heads, task)
    err = float(jnp.max(jnp.abs(out - ref)))
    assert err < 1e-1, f"max abs diff vs reference: {err}"

    print("KERNEL_OK")
</pallas_src>

<mosaic_0001>
module attributes {stable_mosaic.version = 11 : i64} {
  func.func @kernel(%arg0: i32, %arg1: i32, %arg2: memref<2x8x64xbf16, #tpu.memory_space<vmem>>, %arg3: memref<64x32xbf16, #tpu.memory_space<vmem>>, %arg4: memref<1x32xf32, #tpu.memory_space<vmem>>, %arg5: memref<1x32x96xbf16, #tpu.memory_space<vmem>>, %arg6: memref<1x32x32xbf16, #tpu.memory_space<vmem>>, %arg7: memref<1x32x128xbf16, #tpu.memory_space<vmem>>, %arg8: memref<1x128x32xbf16, #tpu.memory_space<vmem>>, %arg9: memref<1x9x32xf32, #tpu.memory_space<vmem>>, %arg10: memref<1x1x128xf32, #tpu.memory_space<vmem>>, %arg11: memref<1x32xf32, #tpu.memory_space<vmem>>, %arg12: memref<1x32xf32, #tpu.memory_space<vmem>>, %arg13: memref<1x32xf32, #tpu.memory_space<vmem>>, %arg14: memref<1x32xf32, #tpu.memory_space<vmem>>, %arg15: memref<32x8xf32, #tpu.memory_space<vmem>>, %arg16: memref<1x8xf32, #tpu.memory_space<vmem>>, %arg17: memref<2x8xf32, #tpu.memory_space<vmem>>, %arg18: memref<2x8x32xf32, #tpu.memory_space<vmem>>) attributes {dimension_semantics = [#tpu.dimension_semantics<parallel>, #tpu.dimension_semantics<arbitrary>], iteration_bounds = array<i64: 1, 2>, scalar_prefetch = 0 : i64, scratch_operands = 1 : i64, tpu.core_type = #tpu.core_type<tc>, window_params = [{transform_indices = @transform_0, window_bounds = array<i64: 2, 8, 64>}, {pipeline_mode = #tpu.pipeline_mode<synchronous>, transform_indices = @transform_1, window_bounds = array<i64: 64, 32>}, {pipeline_mode = #tpu.pipeline_mode<synchronous>, transform_indices = @transform_2, window_bounds = array<i64: 1, 32>}, {transform_indices = @transform_3, window_bounds = array<i64: 1, 32, 96>}, {transform_indices = @transform_4, window_bounds = array<i64: 1, 32, 32>}, {transform_indices = @transform_5, window_bounds = array<i64: 1, 32, 128>}, {transform_indices = @transform_6, window_bounds = array<i64: 1, 128, 32>}, {transform_indices = @transform_7, window_bounds = array<i64: 1, 9, 32>}, {transform_indices = @transform_8, window_bounds = array<i64: 1, 1, 128>}, {pipeline_mode = #tpu.pipeline_mode<synchronous>, transform_indices = @transform_9, window_bounds = array<i64: 1, 32>}, {pipeline_mode = #tpu.pipeline_mode<synchronous>, transform_indices = @transform_10, window_bounds = array<i64: 1, 32>}, {pipeline_mode = #tpu.pipeline_mode<synchronous>, transform_indices = @transform_11, window_bounds = array<i64: 1, 32>}, {pipeline_mode = #tpu.pipeline_mode<synchronous>, transform_indices = @transform_12, window_bounds = array<i64: 1, 32>}, {pipeline_mode = #tpu.pipeline_mode<synchronous>, transform_indices = @transform_13, window_bounds = array<i64: 32, 8>}, {pipeline_mode = #tpu.pipeline_mode<synchronous>, transform_indices = @transform_14, window_bounds = array<i64: 1, 8>}, {transform_indices = @transform_15, window_bounds = array<i64: 2, 8>}]} {
    %c0_i32 = arith.constant 0 : i32
    %0 = arith.cmpi eq, %arg1, %c0_i32 : i32
    %1 = arith.extui %0 : i1 to i32
    %c0_i32_0 = arith.constant 0 : i32
    %2 = arith.cmpi ne, %1, %c0_i32_0 : i32
    scf.if %2 {
      %c0_61 = arith.constant 0 : index
      %c0_62 = arith.constant 0 : index
      %c0_63 = arith.constant 0 : index
      %209 = vector.load %arg2[%c0_61, %c0_62, %c0_63] : memref<2x8x64xbf16, #tpu.memory_space<vmem>>, vector<2x8x64xbf16>
      %210 = vector.shape_cast %209 : vector<2x8x64xbf16> to vector<16x64xbf16>
      %c0_64 = arith.constant 0 : index
      %c0_65 = arith.constant 0 : index
      %211 = vector.load %arg3[%c0_64, %c0_65] : memref<64x32xbf16, #tpu.memory_space<vmem>>, vector<64x32xbf16>
      %cst_66 = arith.constant dense<0.000000e+00> : vector<16x32xf32>
      %212 = tpu.matmul %210, %211, %cst_66 {dimension_numbers = #tpu.dot_dimension_numbers<[1], [0], [0], [1], [0, 0, 1, 1], [], []>} : vector<16x64xbf16>, vector<64x32xbf16>, vector<16x32xf32> -> vector<16x32xf32>
      %c0_67 = arith.constant 0 : index
      %c0_68 = arith.constant 0 : index
      %213 = vector.load %arg4[%c0_67, %c0_68] : memref<1x32xf32, #tpu.memory_space<vmem>>, vector<1x32xf32>
      %214 = vector.broadcast %213 : vector<1x32xf32> to vector<16x32xf32>
      %215 = arith.addf %212, %214 : vector<16x32xf32>
      %216 = vector.shape_cast %215 : vector<16x32xf32> to vector<2x8x32xf32>
      %c0_69 = arith.constant 0 : index
      %c0_70 = arith.constant 0 : index
      %c0_71 = arith.constant 0 : index
      %217 = vector.load %arg18[%c0_69, %c0_70, %c0_71] : memref<2x8x32xf32, #tpu.memory_space<vmem>>, vector<2x8x32xf32>
      tpu.vector_store %arg18[%c0_69, %c0_70, %c0_71], %216 {strides = array<i32>} : memref<2x8x32xf32, #tpu.memory_space<vmem>>, vector<2x8x32xf32>,
    } else {
    }
    %c0 = arith.constant 0 : index
    %c0_1 = arith.constant 0 : index
    %c0_2 = arith.constant 0 : index
    %3 = vector.load %arg18[%c0, %c0_1, %c0_2] : memref<2x8x32xf32, #tpu.memory_space<vmem>>, vector<2x8x32xf32>
    %4 = vector.shape_cast %3 : vector<2x8x32xf32> to vector<16x32xf32>
    %5 = arith.truncf %4 : vector<16x32xf32> to vector<16x32xbf16>
    %c0_3 = arith.constant 0 : index
    %c0_4 = arith.constant 0 : index
    %c0_5 = arith.constant 0 : index
    %6 = vector.load %arg9[%c0_3, %c0_4, %c0_5] : memref<1x9x32xf32, #tpu.memory_space<vmem>>, vector<1x9x32xf32>
    %7 = vector.shape_cast %6 : vector<1x9x32xf32> to vector<9x32xf32>
    %8 = vector.extract_strided_slice %7 {offsets = [0, 0], sizes = [1, 32], strides = [1, 1]} : vector<9x32xf32> to vector<1x32xf32>
    %9 = vector.extract_strided_slice %7 {offsets = [1, 0], sizes = [1, 32], strides = [1, 1]} : vector<9x32xf32> to vector<1x32xf32>
    %10 = vector.extract_strided_slice %7 {offsets = [2, 0], sizes = [1, 32], strides = [1, 1]} : vector<9x32xf32> to vector<1x32xf32>
    %11 = vector.extract_strided_slice %7 {offsets = [3, 0], sizes = [1, 32], strides = [1, 1]} : vector<9x32xf32> to vector<1x32xf32>
    %12 = vector.extract_strided_slice %7 {offsets = [4, 0], sizes = [1, 32], strides = [1, 1]} : vector<9x32xf32> to vector<1x32xf32>
    %13 = vector.extract_strided_slice %7 {offsets = [5, 0], sizes = [1, 32], strides = [1, 1]} : vector<9x32xf32> to vector<1x32xf32>
    %14 = vector.extract_strided_slice %7 {offsets = [6, 0], sizes = [1, 32], strides = [1, 1]} : vector<9x32xf32> to vector<1x32xf32>
    %15 = vector.extract_strided_slice %7 {offsets = [7, 0], sizes = [1, 32], strides = [1, 1]} : vector<9x32xf32> to vector<1x32xf32>
    %16 = vector.extract_strided_slice %7 {offsets = [8, 0], sizes = [1, 32], strides = [1, 1]} : vector<9x32xf32> to vector<1x32xf32>
    %c0_6 = arith.constant 0 : index
    %c0_7 = arith.constant 0 : index
    %c0_8 = arith.constant 0 : index
    %17 = vector.load %arg5[%c0_6, %c0_7, %c0_8] : memref<1x32x96xbf16, #tpu.memory_space<vmem>>, vector<1x32x96xbf16>
    %18 = vector.shape_cast %17 : vector<1x32x96xbf16> to vector<32x96xbf16>
    %cst = arith.constant dense<0.000000e+00> : vector<16x96xf32>
    %19 = tpu.matmul %5, %18, %cst {dimension_numbers = #tpu.dot_dimension_numbers<[1], [0], [0], [1], [0, 0, 1, 1], [], []>} : vector<16x32xbf16>, vector<32x96xbf16>, vector<16x96xf32> -> vector<16x96xf32>
    %20 = vector.extract_strided_slice %19 {offsets = [0, 0], sizes = [16, 32], strides = [1, 1]} : vector<16x96xf32> to vector<16x32xf32>
    %21 = vector.broadcast %8 : vector<1x32xf32> to vector<16x32xf32>
    %22 = arith.addf %20, %21 : vector<16x32xf32>
    %23 = vector.extract_strided_slice %19 {offsets = [0, 32], sizes = [16, 32], strides = [1, 1]} : vector<16x96xf32> to vector<16x32xf32>
    %24 = vector.broadcast %9 : vector<1x32xf32> to vector<16x32xf32>
    %25 = arith.addf %23, %24 : vector<16x32xf32>
    %26 = vector.extract_strided_slice %19 {offsets = [0, 64], sizes = [16, 32], strides = [1, 1]} : vector<16x96xf32> to vector<16x32xf32>
    %27 = vector.broadcast %10 : vector<1x32xf32> to vector<16x32xf32>
    %28 = arith.addf %26, %27 : vector<16x32xf32>
    %29 = vector.extract_strided_slice %22 {offsets = [0, 0], sizes = [16, 8], strides = [1, 1]} : vector<16x32xf32> to vector<16x8xf32>
    %30 = vector.shape_cast %29 : vector<16x8xf32> to vector<2x8x8xf32>
    %31 = arith.truncf %30 : vector<2x8x8xf32> to vector<2x8x8xbf16>
    %32 = vector.extract_strided_slice %25 {offsets = [0, 0], sizes = [16, 8], strides = [1, 1]} : vector<16x32xf32> to vector<16x8xf32>
    %33 = vector.shape_cast %32 : vector<16x8xf32> to vector<2x8x8xf32>
    %34 = arith.truncf %33 : vector<2x8x8xf32> to vector<2x8x8xbf16>
    %35 = vector.extract_strided_slice %28 {offsets = [0, 0], sizes = [16, 8], strides = [1, 1]} : vector<16x32xf32> to vector<16x8xf32>
    %36 = vector.shape_cast %35 : vector<16x8xf32> to vector<2x8x8xf32>
    %37 = arith.truncf %36 : vector<2x8x8xf32> to vector<2x8x8xbf16>
    "tpu.trace_start"() <{level = 10 : i32, message = "bqd,bkd->bqk"}> : () -> ()
    %cst_9 = arith.constant dense<0.000000e+00> : vector<2x8x8xf32>
    %38 = tpu.matmul %31, %34, %cst_9 {dimension_numbers = #tpu.dot_dimension_numbers<[2], [2], [1], [1], [0, 0, 0, 1, 1, 1], [0], [0]>} : vector<2x8x8xbf16>, vector<2x8x8xbf16>, vector<2x8x8xf32> -> vector<2x8x8xf32>
    "tpu.trace_stop"() : () -> ()
    %cst_10 = arith.constant 0.353553385 : f32
    %39 = vector.broadcast %cst_10 : f32 to vector<2x8x8xf32>
    %40 = arith.mulf %38, %39 : vector<2x8x8xf32>
    %cst_11 = arith.constant dense<0xFF800000> : vector<2x8xf32>
    %41 = vector.multi_reduction <maximumf>, %40, %cst_11 [2] : vector<2x8x8xf32> to vector<2x8xf32>
    %42 = vector.shape_cast %41 : vector<2x8xf32> to vector<2x8x1xf32>
    %43 = vector.broadcast %42 : vector<2x8x1xf32> to vector<2x8x8xf32>
    %44 = arith.subf %40, %43 : vector<2x8x8xf32>
    %45 = math.exp %44 : vector<2x8x8xf32>
    %cst_12 = arith.constant dense<0.000000e+00> : vector<2x8xf32>
    %46 = vector.multi_reduction <add>, %45, %cst_12 [2] : vector<2x8x8xf32> to vector<2x8xf32>
    %47 = vector.shape_cast %46 : vector<2x8xf32> to vector<2x8x1xf32>
    %48 = tpu.reciprocal %47 {approx = true} : vector<2x8x1xf32> -> vector<2x8x1xf32>
    %49 = vector.broadcast %48 : vector<2x8x1xf32> to vector<2x8x8xf32>
    %50 = arith.mulf %45, %49 : vector<2x8x8xf32>
    %51 = arith.truncf %50 : vector<2x8x8xf32> to vector<2x8x8xbf16>
    "tpu.trace_start"() <{level = 10 : i32, message = "bqk,bkd->bqd"}> : () -> ()
    %cst_13 = arith.constant dense<0.000000e+00> : vector<2x8x8xf32>
    %52 = tpu.matmul %51, %37, %cst_13 {dimension_numbers = #tpu.dot_dimension_numbers<[2], [1], [1], [2], [0, 0, 0, 1, 1, 2], [0], [0]>} : vector<2x8x8xbf16>, vector<2x8x8xbf16>, vector<2x8x8xf32> -> vector<2x8x8xf32>
    "tpu.trace_stop"() : () -> ()
    %53 = vector.shape_cast %52 : vector<2x8x8xf32> to vector<16x8xf32>
    %54 = vector.extract_strided_slice %22 {offsets = [0, 8], sizes = [16, 8], strides = [1, 1]} : vector<16x32xf32> to vector<16x8xf32>
    %55 = vector.shape_cast %54 : vector<16x8xf32> to vector<2x8x8xf32>
    %56 = arith.truncf %55 : vector<2x8x8xf32> to vector<2x8x8xbf16>
    %57 = vector.extract_strided_slice %25 {offsets = [0, 8], sizes = [16, 8], strides = [1, 1]} : vector<16x32xf32> to vector<16x8xf32>
    %58 = vector.shape_cast %57 : vector<16x8xf32> to vector<2x8x8xf32>
    %59 = arith.truncf %58 : vector<2x8x8xf32> to vector<2x8x8xbf16>
    %60 = vector.extract_strided_slice %28 {offsets = [0, 8], sizes = [16, 8], strides = [1, 1]} : vector<16x32xf32> to vector<16x8xf32>
    %61 = vector.shape_cast %60 : vector<16x8xf32> to vector<2x8x8xf32>
    %62 = arith.truncf %61 : vector<2x8x8xf32> to vector<2x8x8xbf16>
    "tpu.trace_start"() <{level = 10 : i32, message = "bqd,bkd->bqk"}> : () -> ()
    %cst_14 = arith.constant dense<0.000000e+00> : vector<2x8x8xf32>
    %63 = tpu.matmul %56, %59, %cst_14 {dimension_numbers = #tpu.dot_dimension_numbers<[2], [2], [1], [1], [0, 0, 0, 1, 1, 1], [0], [0]>} : vector<2x8x8xbf16>, vector<2x8x8xbf16>, vector<2x8x8xf32> -> vector<2x8x8xf32>
    "tpu.trace_stop"() : () -> ()
    %cst_15 = arith.constant 0.353553385 : f32
    %64 = vector.broadcast %cst_15 : f32 to vector<2x8x8xf32>
    %65 = arith.mulf %63, %64 : vector<2x8x8xf32>
    %cst_16 = arith.constant dense<0xFF800000> : vector<2x8xf32>
    %66 = vector.multi_reduction <maximumf>, %65, %cst_16 [2] : vector<2x8x8xf32> to vector<2x8xf32>
    %67 = vector.shape_cast %66 : vector<2x8xf32> to vector<2x8x1xf32>
    %68 = vector.broadcast %67 : vector<2x8x1xf32> to vector<2x8x8xf32>
    %69 = arith.subf %65, %68 : vector<2x8x8xf32>
    %70 = math.exp %69 : vector<2x8x8xf32>
    %cst_17 = arith.constant dense<0.000000e+00> : vector<2x8xf32>
    %71 = vector.multi_reduction <add>, %70, %cst_17 [2] : vector<2x8x8xf32> to vector<2x8xf32>
    %72 = vector.shape_cast %71 : vector<2x8xf32> to vector<2x8x1xf32>
    %73 = tpu.reciprocal %72 {approx = true} : vector<2x8x1xf32> -> vector<2x8x1xf32>
    %74 = vector.broadcast %73 : vector<2x8x1xf32> to vector<2x8x8xf32>
    %75 = arith.mulf %70, %74 : vector<2x8x8xf32>
    %76 = arith.truncf %75 : vector<2x8x8xf32> to vector<2x8x8xbf16>
    "tpu.trace_start"() <{level = 10 : i32, message = "bqk,bkd->bqd"}> : () -> ()
    %cst_18 = arith.constant dense<0.000000e+00> : vector<2x8x8xf32>
    %77 = tpu.matmul %76, %62, %cst_18 {dimension_numbers = #tpu.dot_dimension_numbers<[2], [1], [1], [2], [0, 0, 0, 1, 1, 2], [0], [0]>} : vector<2x8x8xbf16>, vector<2x8x8xbf16>, vector<2x8x8xf32> -> vector<2x8x8xf32>
    "tpu.trace_stop"() : () -> ()
    %78 = vector.shape_cast %77 : vector<2x8x8xf32> to vector<16x8xf32>
    %79 = vector.extract_strided_slice %22 {offsets = [0, 16], sizes = [16, 8], strides = [1, 1]} : vector<16x32xf32> to vector<16x8xf32>
    %80 = vector.shape_cast %79 : vector<16x8xf32> to vector<2x8x8xf32>
    %81 = arith.truncf %80 : vector<2x8x8xf32> to vector<2x8x8xbf16>
    %82 = vector.extract_strided_slice %25 {offsets = [0, 16], sizes = [16, 8], strides = [1, 1]} : vector<16x32xf32> to vector<16x8xf32>
    %83 = vector.shape_cast %82 : vector<16x8xf32> to vector<2x8x8xf32>
    %84 = arith.truncf %83 : vector<2x8x8xf32> to vector<2x8x8xbf16>
    %85 = vector.extract_strided_slice %28 {offsets = [0, 16], sizes = [16, 8], strides = [1, 1]} : vector<16x32xf32> to vector<16x8xf32>
    %86 = vector.shape_cast %85 : vector<16x8xf32> to vector<2x8x8xf32>
    %87 = arith.truncf %86 : vector<2x8x8xf32> to vector<2x8x8xbf16>
    "tpu.trace_start"() <{level = 10 : i32, message = "bqd,bkd->bqk"}> : () -> ()
    %cst_19 = arith.constant dense<0.000000e+00> : vector<2x8x8xf32>
    %88 = tpu.matmul %81, %84, %cst_19 {dimension_numbers = #tpu.dot_dimension_numbers<[2], [2], [1], [1], [0, 0, 0, 1, 1, 1], [0], [0]>} : vector<2x8x8xbf16>, vector<2x8x8xbf16>, vector<2x8x8xf32> -> vector<2x8x8xf32>
    "tpu.trace_stop"() : () -> ()
    %cst_20 = arith.constant 0.353553385 : f32
    %89 = vector.broadcast %cst_20 : f32 to vector<2x8x8xf32>
    %90 = arith.mulf %88, %89 : vector<2x8x8xf32>
    %cst_21 = arith.constant dense<0xFF800000> : vector<2x8xf32>
    %91 = vector.multi_reduction <maximumf>, %90, %cst_21 [2] : vector<2x8x8xf32> to vector<2x8xf32>
    %92 = vector.shape_cast %91 : vector<2x8xf32> to vector<2x8x1xf32>
    %93 = vector.broadcast %92 : vector<2x8x1xf32> to vector<2x8x8xf32>
    %94 = arith.subf %90, %93 : vector<2x8x8xf32>
    %95 = math.exp %94 : vector<2x8x8xf32>
    %cst_22 = arith.constant dense<0.000000e+00> : vector<2x8xf32>
    %96 = vector.multi_reduction <add>, %95, %cst_22 [2] : vector<2x8x8xf32> to vector<2x8xf32>
    %97 = vector.shape_cast %96 : vector<2x8xf32> to vector<2x8x1xf32>
    %98 = tpu.reciprocal %97 {approx = true} : vector<2x8x1xf32> -> vector<2x8x1xf32>
    %99 = vector.broadcast %98 : vector<2x8x1xf32> to vector<2x8x8xf32>
    %100 = arith.mulf %95, %99 : vector<2x8x8xf32>
    %101 = arith.truncf %100 : vector<2x8x8xf32> to vector<2x8x8xbf16>
    "tpu.trace_start"() <{level = 10 : i32, message = "bqk,bkd->bqd"}> : () -> ()
    %cst_23 = arith.constant dense<0.000000e+00> : vector<2x8x8xf32>
    %102 = tpu.matmul %101, %87, %cst_23 {dimension_numbers = #tpu.dot_dimension_numbers<[2], [1], [1], [2], [0, 0, 0, 1, 1, 2], [0], [0]>} : vector<2x8x8xbf16>, vector<2x8x8xbf16>, vector<2x8x8xf32> -> vector<2x8x8xf32>
    "tpu.trace_stop"() : () -> ()
    %103 = vector.shape_cast %102 : vector<2x8x8xf32> to vector<16x8xf32>
    %104 = vector.extract_strided_slice %22 {offsets = [0, 24], sizes = [16, 8], strides = [1, 1]} : vector<16x32xf32> to vector<16x8xf32>
    %105 = vector.shape_cast %104 : vector<16x8xf32> to vector<2x8x8xf32>
    %106 = arith.truncf %105 : vector<2x8x8xf32> to vector<2x8x8xbf16>
    %107 = vector.extract_strided_slice %25 {offsets = [0, 24], sizes = [16, 8], strides = [1, 1]} : vector<16x32xf32> to vector<16x8xf32>
    %108 = vector.shape_cast %107 : vector<16x8xf32> to vector<2x8x8xf32>
    %109 = arith.truncf %108 : vector<2x8x8xf32> to vector<2x8x8xbf16>
    %110 = vector.extract_strided_slice %28 {offsets = [0, 24], sizes = [16, 8], strides = [1, 1]} : vector<16x32xf32> to vector<16x8xf32>
    %111 = vector.shape_cast %110 : vector<16x8xf32> to vector<2x8x8xf32>
    %112 = arith.truncf %111 : vector<2x8x8xf32> to vector<2x8x8xbf16>
    "tpu.trace_start"() <{level = 10 : i32, message = "bqd,bkd->bqk"}> : () -> ()
    %cst_24 = arith.constant dense<0.000000e+00> : vector<2x8x8xf32>
    %113 = tpu.matmul %106, %109, %cst_24 {dimension_numbers = #tpu.dot_dimension_numbers<[2], [2], [1], [1], [0, 0, 0, 1, 1, 1], [0], [0]>} : vector<2x8x8xbf16>, vector<2x8x8xbf16>, vector<2x8x8xf32> -> vector<2x8x8xf32>
    "tpu.trace_stop"() : () -> ()
    %cst_25 = arith.constant 0.353553385 : f32
    %114 = vector.broadcast %cst_25 : f32 to vector<2x8x8xf32>
    %115 = arith.mulf %113, %114 : vector<2x8x8xf32>
    %cst_26 = arith.constant dense<0xFF800000> : vector<2x8xf32>
    %116 = vector.multi_reduction <maximumf>, %115, %cst_26 [2] : vector<2x8x8xf32> to vector<2x8xf32>
    %117 = vector.shape_cast %116 : vector<2x8xf32> to vector<2x8x1xf32>
    %118 = vector.broadcast %117 : vector<2x8x1xf32> to vector<2x8x8xf32>
    %119 = arith.subf %115, %118 : vector<2x8x8xf32>
    %120 = math.exp %119 : vector<2x8x8xf32>
    %cst_27 = arith.constant dense<0.000000e+00> : vector<2x8xf32>
    %121 = vector.multi_reduction <add>, %120, %cst_27 [2] : vector<2x8x8xf32> to vector<2x8xf32>
    %122 = vector.shape_cast %121 : vector<2x8xf32> to vector<2x8x1xf32>
    %123 = tpu.reciprocal %122 {approx = true} : vector<2x8x1xf32> -> vector<2x8x1xf32>
    %124 = vector.broadcast %123 : vector<2x8x1xf32> to vector<2x8x8xf32>
    %125 = arith.mulf %120, %124 : vector<2x8x8xf32>
    %126 = arith.truncf %125 : vector<2x8x8xf32> to vector<2x8x8xbf16>
    "tpu.trace_start"() <{level = 10 : i32, message = "bqk,bkd->bqd"}> : () -> ()
    %cst_28 = arith.constant dense<0.000000e+00> : vector<2x8x8xf32>
    %127 = tpu.matmul %126, %112, %cst_28 {dimension_numbers = #tpu.dot_dimension_numbers<[2], [1], [1], [2], [0, 0, 0, 1, 1, 2], [0], [0]>} : vector<2x8x8xbf16>, vector<2x8x8xbf16>, vector<2x8x8xf32> -> vector<2x8x8xf32>
    "tpu.trace_stop"() : () -> ()
    %128 = vector.shape_cast %127 : vector<2x8x8xf32> to vector<16x8xf32>
    %129 = tpu.concatenate %53, %78, %103, %128 in 1 : vector<16x8xf32>, vector<16x8xf32>, vector<16x8xf32>, vector<16x8xf32> -> vector<16x32xf32>
    %130 = arith.truncf %129 : vector<16x32xf32> to vector<16x32xbf16>
    %c0_29 = arith.constant 0 : index
    %c0_30 = arith.constant 0 : index
    %c0_31 = arith.constant 0 : index
    %131 = vector.load %arg6[%c0_29, %c0_30, %c0_31] : memref<1x32x32xbf16, #tpu.memory_space<vmem>>, vector<1x32x32xbf16>
    %132 = vector.shape_cast %131 : vector<1x32x32xbf16> to vector<32x32xbf16>
    %cst_32 = arith.constant dense<0.000000e+00> : vector<16x32xf32>
    %133 = tpu.matmul %130, %132, %cst_32 {dimension_numbers = #tpu.dot_dimension_numbers<[1], [0], [0], [1], [0, 0, 1, 1], [], []>} : vector<16x32xbf16>, vector<32x32xbf16>, vector<16x32xf32> -> vector<16x32xf32>
    %134 = vector.broadcast %11 : vector<1x32xf32> to vector<16x32xf32>
    %135 = arith.addf %133, %134 : vector<16x32xf32>
    %136 = arith.addf %4, %135 : vector<16x32xf32>
    %cst_33 = arith.constant dense<0.000000e+00> : vector<16xf32>
    %137 = vector.multi_reduction <add>, %136, %cst_33 [1] : vector<16x32xf32> to vector<16xf32>
    %138 = vector.shape_cast %137 : vector<16xf32> to vector<16x1xf32>
    %cst_34 = arith.constant 3.200000e+01 : f32
    %139 = vector.broadcast %cst_34 : f32 to vector<16x1xf32>
    %140 = arith.divf %138, %139 : vector<16x1xf32>
    %141 = vector.broadcast %140 : vector<16x1xf32> to vector<16x32xf32>
    %142 = arith.subf %136, %141 : vector<16x32xf32>
    %143 = arith.mulf %142, %142 : vector<16x32xf32>
    %cst_35 = arith.constant dense<0.000000e+00> : vector<16xf32>
    %144 = vector.multi_reduction <add>, %143, %cst_35 [1] : vector<16x32xf32> to vector<16xf32>
    %145 = vector.shape_cast %144 : vector<16xf32> to vector<16x1xf32>
    %cst_36 = arith.constant 3.200000e+01 : f32
    %146 = vector.broadcast %cst_36 : f32 to vector<16x1xf32>
    %147 = arith.divf %145, %146 : vector<16x1xf32>
    %148 = vector.broadcast %140 : vector<16x1xf32> to vector<16x32xf32>
    %149 = arith.subf %136, %148 : vector<16x32xf32>
    %cst_37 = arith.constant 9.99999974E-6 : f32
    %150 = vector.broadcast %cst_37 : f32 to vector<16x1xf32>
    %151 = arith.addf %147, %150 : vector<16x1xf32>
    %152 = math.rsqrt %151 : vector<16x1xf32>
    %153 = vector.broadcast %152 : vector<16x1xf32> to vector<16x32xf32>
    %154 = arith.mulf %149, %153 : vector<16x32xf32>
    %155 = vector.broadcast %12 : vector<1x32xf32> to vector<16x32xf32>
    %156 = arith.mulf %154, %155 : vector<16x32xf32>
    %157 = vector.broadcast %13 : vector<1x32xf32> to vector<16x32xf32>
    %158 = arith.addf %156, %157 : vector<16x32xf32>
    %159 = arith.truncf %158 : vector<16x32xf32> to vector<16x32xbf16>
    %c0_38 = arith.constant 0 : index
    %c0_39 = arith.constant 0 : index
    %c0_40 = arith.constant 0 : index
    %160 = vector.load %arg7[%c0_38, %c0_39, %c0_40] : memref<1x32x128xbf16, #tpu.memory_space<vmem>>, vector<1x32x128xbf16>
    %161 = vector.shape_cast %160 : vector<1x32x128xbf16> to vector<32x128xbf16>
    %cst_41 = arith.constant dense<0.000000e+00> : vector<16x128xf32>
    %162 = tpu.matmul %159, %161, %cst_41 {dimension_numbers = #tpu.dot_dimension_numbers<[1], [0], [0], [1], [0, 0, 1, 1], [], []>} : vector<16x32xbf16>, vector<32x128xbf16>, vector<16x128xf32> -> vector<16x128xf32>
    %c0_42 = arith.constant 0 : index
    %c0_43 = arith.constant 0 : index
    %c0_44 = arith.constant 0 : index
    %163 = vector.load %arg10[%c0_42, %c0_43, %c0_44] : memref<1x1x128xf32, #tpu.memory_space<vmem>>, vector<1x1x128xf32>
    %164 = vector.shape_cast %163 : vector<1x1x128xf32> to vector<1x128xf32>
    %165 = vector.broadcast %164 : vector<1x128xf32> to vector<16x128xf32>
    %166 = arith.addf %162, %165 : vector<16x128xf32>
    %cst_45 = arith.constant 5.000000e-01 : f32
    %167 = vector.broadcast %cst_45 : f32 to vector<16x128xf32>
    %168 = arith.mulf %167, %166 : vector<16x128xf32>
    %cst_46 = arith.constant 0.707106769 : f32
    %169 = vector.broadcast %cst_46 : f32 to vector<16x128xf32>
    %170 = arith.mulf %166, %169 : vector<16x128xf32>
    %171 = math.erf %170 : vector<16x128xf32>
    %cst_47 = arith.constant 1.000000e+00 : f32
    %172 = vector.broadcast %cst_47 : f32 to vector<16x128xf32>
    %173 = arith.addf %172, %171 : vector<16x128xf32>
    %174 = arith.mulf %168, %173 : vector<16x128xf32>
    %175 = arith.truncf %174 : vector<16x128xf32> to vector<16x128xbf16>
    %c0_48 = arith.constant 0 : index
    %c0_49 = arith.constant 0 : index
    %c0_50 = arith.constant 0 : index
    %176 = vector.load %arg8[%c0_48, %c0_49, %c0_50] : memref<1x128x32xbf16, #tpu.memory_space<vmem>>, vector<1x128x32xbf16>
    %177 = vector.shape_cast %176 : vector<1x128x32xbf16> to vector<128x32xbf16>
    %cst_51 = arith.constant dense<0.000000e+00> : vector<16x32xf32>
    %178 = tpu.matmul %175, %177, %cst_51 {dimension_numbers = #tpu.dot_dimension_numbers<[1], [0], [0], [1], [0, 0, 1, 1], [], []>} : vector<16x128xbf16>, vector<128x32xbf16>, vector<16x32xf32> -> vector<16x32xf32>
    %179 = vector.broadcast %14 : vector<1x32xf32> to vector<16x32xf32>
    %180 = arith.addf %178, %179 : vector<16x32xf32>
    %181 = arith.addf %158, %180 : vector<16x32xf32>
    %cst_52 = arith.constant dense<0.000000e+00> : vector<16xf32>
    %182 = vector.multi_reduction <add>, %181, %cst_52 [1] : vector<16x32xf32> to vector<16xf32>
    %183 = vector.shape_cast %182 : vector<16xf32> to vector<16x1xf32>
    %cst_53 = arith.constant 3.200000e+01 : f32
    %184 = vector.broadcast %cst_53 : f32 to vector<16x1xf32>
    %185 = arith.divf %183, %184 : vector<16x1xf32>
    %186 = vector.broadcast %185 : vector<16x1xf32> to vector<16x32xf32>
    %187 = arith.subf %181, %186 : vector<16x32xf32>
    %188 = arith.mulf %187, %187 : vector<16x32xf32>
    %cst_54 = arith.constant dense<0.000000e+00> : vector<16xf32>
    %189 = vector.multi_reduction <add>, %188, %cst_54 [1] : vector<16x32xf32> to vector<16xf32>
    %190 = vector.shape_cast %189 : vector<16xf32> to vector<16x1xf32>
    %cst_55 = arith.constant 3.200000e+01 : f32
    %191 = vector.broadcast %cst_55 : f32 to vector<16x1xf32>
    %192 = arith.divf %190, %191 : vector<16x1xf32>
    %193 = vector.broadcast %185 : vector<16x1xf32> to vector<16x32xf32>
    %194 = arith.subf %181, %193 : vector<16x32xf32>
    %cst_56 = arith.constant 9.99999974E-6 : f32
    %195 = vector.broadcast %cst_56 : f32 to vector<16x1xf32>
    %196 = arith.addf %192, %195 : vector<16x1xf32>
    %197 = math.rsqrt %196 : vector<16x1xf32>
    %198 = vector.broadcast %197 : vector<16x1xf32> to vector<16x32xf32>
    %199 = arith.mulf %194, %198 : vector<16x32xf32>
    %200 = vector.broadcast %15 : vector<1x32xf32> to vector<16x32xf32>
    %201 = arith.mulf %199, %200 : vector<16x32xf32>
    %202 = vector.broadcast %16 : vector<1x32xf32> to vector<16x32xf32>
    %203 = arith.addf %201, %202 : vector<16x32xf32>
    %204 = vector.shape_cast %203 : vector<16x32xf32> to vector<2x8x32xf32>
    %c0_57 = arith.constant 0 : index
    %c0_58 = arith.constant 0 : index
    %c0_59 = arith.constant 0 : index
    %205 = vector.load %arg18[%c0_57, %c0_58, %c0_59] : memref<2x8x32xf32, #tpu.memory_space<vmem>>, vector<2x8x32xf32>
    tpu.vector_store %arg18[%c0_57, %c0_58, %c0_59], %204 {strides = array<i32>} : memref<2x8x32xf32, #tpu.memory_space<vmem>>, vector<2x8x32xf32>,
    %c1_i32 = arith.constant 1 : i32
    %206 = arith.cmpi eq, %arg1, %c1_i32 : i32
    %207 = arith.extui %206 : i1 to i32
    %c0_i32_60 = arith.constant 0 : i32
    %208 = arith.cmpi ne, %207, %c0_i32_60 : i32
    scf.if %208 {
      %209 = vector.extract_strided_slice %204 {offsets = [0, 7, 0], sizes = [2, 1, 32], strides = [1, 1, 1]} : vector<2x8x32xf32> to vector<2x1x32xf32>
      %210 = vector.shape_cast %209 : vector<2x1x32xf32> to vector<2x32xf32>
      %c0_61 = arith.constant 0 : index
      %c0_62 = arith.constant 0 : index
      %211 = vector.load %arg11[%c0_61, %c0_62] : memref<1x32xf32, #tpu.memory_space<vmem>>, vector<1x32xf32>
      %c0_63 = arith.constant 0 : index
      %c0_64 = arith.constant 0 : index
      %212 = vector.load %arg12[%c0_63, %c0_64] : memref<1x32xf32, #tpu.memory_space<vmem>>, vector<1x32xf32>
      %cst_65 = arith.constant dense<0.000000e+00> : vector<2xf32>
      %213 = vector.multi_reduction <add>, %210, %cst_65 [1] : vector<2x32xf32> to vector<2xf32>
      %214 = vector.shape_cast %213 : vector<2xf32> to vector<2x1xf32>
      %cst_66 = arith.constant 3.200000e+01 : f32
      %215 = vector.broadcast %cst_66 : f32 to vector<2x1xf32>
      %216 = arith.divf %214, %215 : vector<2x1xf32>
      %217 = vector.broadcast %216 : vector<2x1xf32> to vector<2x32xf32>
      %218 = arith.subf %210, %217 : vector<2x32xf32>
      %219 = arith.mulf %218, %218 : vector<2x32xf32>
      %cst_67 = arith.constant dense<0.000000e+00> : vector<2xf32>
      %220 = vector.multi_reduction <add>, %219, %cst_67 [1] : vector<2x32xf32> to vector<2xf32>
      %221 = vector.shape_cast %220 : vector<2xf32> to vector<2x1xf32>
      %cst_68 = arith.constant 3.200000e+01 : f32
      %222 = vector.broadcast %cst_68 : f32 to vector<2x1xf32>
      %223 = arith.divf %221, %222 : vector<2x1xf32>
      %224 = vector.broadcast %216 : vector<2x1xf32> to vector<2x32xf32>
      %225 = arith.subf %210, %224 : vector<2x32xf32>
      %cst_69 = arith.constant 9.99999974E-6 : f32
      %226 = vector.broadcast %cst_69 : f32 to vector<2x1xf32>
      %227 = arith.addf %223, %226 : vector<2x1xf32>
      %228 = math.rsqrt %227 : vector<2x1xf32>
      %229 = vector.broadcast %228 : vector<2x1xf32> to vector<2x32xf32>
      %230 = arith.mulf %225, %229 : vector<2x32xf32>
      %231 = vector.broadcast %211 : vector<1x32xf32> to vector<2x32xf32>
      %232 = arith.mulf %230, %231 : vector<2x32xf32>
      %233 = vector.broadcast %212 : vector<1x32xf32> to vector<2x32xf32>
      %234 = arith.addf %232, %233 : vector<2x32xf32>
      %c0_70 = arith.constant 0 : index
      %c0_71 = arith.constant 0 : index
      %235 = vector.load %arg13[%c0_70, %c0_71] : memref<1x32xf32, #tpu.memory_space<vmem>>, vector<1x32xf32>
      %c0_72 = arith.constant 0 : index
      %c0_73 = arith.constant 0 : index
      %236 = vector.load %arg14[%c0_72, %c0_73] : memref<1x32xf32, #tpu.memory_space<vmem>>, vector<1x32xf32>
      %cst_74 = arith.constant dense<0.000000e+00> : vector<2xf32>
      %237 = vector.multi_reduction <add>, %234, %cst_74 [1] : vector<2x32xf32> to vector<2xf32>
      %238 = vector.shape_cast %237 : vector<2xf32> to vector<2x1xf32>
      %cst_75 = arith.constant 3.200000e+01 : f32
      %239 = vector.broadcast %cst_75 : f32 to vector<2x1xf32>
      %240 = arith.divf %238, %239 : vector<2x1xf32>
      %241 = vector.broadcast %240 : vector<2x1xf32> to vector<2x32xf32>
      %242 = arith.subf %234, %241 : vector<2x32xf32>
      %243 = arith.mulf %242, %242 : vector<2x32xf32>
      %cst_76 = arith.constant dense<0.000000e+00> : vector<2xf32>
      %244 = vector.multi_reduction <add>, %243, %cst_76 [1] : vector<2x32xf32> to vector<2xf32>
      %245 = vector.shape_cast %244 : vector<2xf32> to vector<2x1xf32>
      %cst_77 = arith.constant 3.200000e+01 : f32
      %246 = vector.broadcast %cst_77 : f32 to vector<2x1xf32>
      %247 = arith.divf %245, %246 : vector<2x1xf32>
      %248 = vector.broadcast %240 : vector<2x1xf32> to vector<2x32xf32>
      %249 = arith.subf %234, %248 : vector<2x32xf32>
      %cst_78 = arith.constant 9.99999974E-6 : f32
      %250 = vector.broadcast %cst_78 : f32 to vector<2x1xf32>
      %251 = arith.addf %247, %250 : vector<2x1xf32>
      %252 = math.rsqrt %251 : vector<2x1xf32>
      %253 = vector.broadcast %252 : vector<2x1xf32> to vector<2x32xf32>
      %254 = arith.mulf %249, %253 : vector<2x32xf32>
      %255 = vector.broadcast %235 : vector<1x32xf32> to vector<2x32xf32>
      %256 = arith.mulf %254, %255 : vector<2x32xf32>
      %257 = vector.broadcast %236 : vector<1x32xf32> to vector<2x32xf32>
      %258 = arith.addf %256, %257 : vector<2x32xf32>
      %c0_79 = arith.constant 0 : index
      %c0_80 = arith.constant 0 : index
      %259 = vector.load %arg15[%c0_79, %c0_80] : memref<32x8xf32, #tpu.memory_space<vmem>>, vector<32x8xf32>
      %cst_81 = arith.constant dense<0.000000e+00> : vector<2x8xf32>
      %260 = tpu.matmul %258, %259, %cst_81 {dimension_numbers = #tpu.dot_dimension_numbers<[1], [0], [0], [1], [0, 0, 1, 1], [], []>} : vector<2x32xf32>, vector<32x8xf32>, vector<2x8xf32> -> vector<2x8xf32>
      %c0_82 = arith.constant 0 : index
      %c0_83 = arith.constant 0 : index
      %261 = vector.load %arg16[%c0_82, %c0_83] : memref<1x8xf32, #tpu.memory_space<vmem>>, vector<1x8xf32>
      %262 = vector.broadcast %261 : vector<1x8xf32> to vector<2x8xf32>
      %263 = arith.addf %260, %262 : vector<2x8xf32>
      %c0_84 = arith.constant 0 : index
      %c0_85 = arith.constant 0 : index
      %264 = vector.load %arg17[%c0_84, %c0_85] : memref<2x8xf32, #tpu.memory_space<vmem>>, vector<2x8xf32>
      tpu.vector_store %arg17[%c0_84, %c0_85], %263 {strides = array<i32>} : memref<2x8xf32, #tpu.memory_space<vmem>>, vector<2x8xf32>,
    } else {
    }
    return
  }
  func.func @transform_0(%arg0: i32, %arg1: i32) -> (i32, i32, i32) {
    %c0_i32 = arith.constant 0 : i32
    %c0_i32_0 = arith.constant 0 : i32
    %c0_i32_1 = arith.constant 0 : i32
    return %arg0, %c0_i32, %c0_i32_0 : i32, i32, i32
  }
  func.func @transform_1(%arg0: i32, %arg1: i32) -> (i32, i32) {
    %c0_i32 = arith.constant 0 : i32
    %c0_i32_0 = arith.constant 0 : i32
    %c0_i32_1 = arith.constant 0 : i32
    return %c0_i32, %c0_i32_0 : i32, i32
  }
  func.func @transform_2(%arg0: i32, %arg1: i32) -> (i32, i32) {
    %c0_i32 = arith.constant 0 : i32
    %c0_i32_0 = arith.constant 0 : i32
    %c0_i32_1 = arith.constant 0 : i32
    return %c0_i32, %c0_i32_0 : i32, i32
  }
  func.func @transform_3(%arg0: i32, %arg1: i32) -> (i32, i32, i32) {
    %c0_i32 = arith.constant 0 : i32
    %c0_i32_0 = arith.constant 0 : i32
    %c0_i32_1 = arith.constant 0 : i32
    return %arg1, %c0_i32, %c0_i32_0 : i32, i32, i32
  }
  func.func @transform_4(%arg0: i32, %arg1: i32) -> (i32, i32, i32) {
    %c0_i32 = arith.constant 0 : i32
    %c0_i32_0 = arith.constant 0 : i32
    %c0_i32_1 = arith.constant 0 : i32
    return %arg1, %c0_i32, %c0_i32_0 : i32, i32, i32
  }
  func.func @transform_5(%arg0: i32, %arg1: i32) -> (i32, i32, i32) {
    %c0_i32 = arith.constant 0 : i32
    %c0_i32_0 = arith.constant 0 : i32
    %c0_i32_1 = arith.constant 0 : i32
    return %arg1, %c0_i32, %c0_i32_0 : i32, i32, i32
  }
  func.func @transform_6(%arg0: i32, %arg1: i32) -> (i32, i32, i32) {
    %c0_i32 = arith.constant 0 : i32
    %c0_i32_0 = arith.constant 0 : i32
    %c0_i32_1 = arith.constant 0 : i32
    return %arg1, %c0_i32, %c0_i32_0 : i32, i32, i32
  }
  func.func @transform_7(%arg0: i32, %arg1: i32) -> (i32, i32, i32) {
    %c0_i32 = arith.constant 0 : i32
    %c0_i32_0 = arith.constant 0 : i32
    %c0_i32_1 = arith.constant 0 : i32
    return %arg1, %c0_i32, %c0_i32_0 : i32, i32, i32
  }
  func.func @transform_8(%arg0: i32, %arg1: i32) -> (i32, i32, i32) {
    %c0_i32 = arith.constant 0 : i32
    %c0_i32_0 = arith.constant 0 : i32
    %c0_i32_1 = arith.constant 0 : i32
    return %arg1, %c0_i32, %c0_i32_0 : i32, i32, i32
  }
  func.func @transform_9(%arg0: i32, %arg1: i32) -> (i32, i32) {
    %c0_i32 = arith.constant 0 : i32
    %c0_i32_0 = arith.constant 0 : i32
    %c0_i32_1 = arith.constant 0 : i32
    return %c0_i32, %c0_i32_0 : i32, i32
  }
  func.func @transform_10(%arg0: i32, %arg1: i32) -> (i32, i32) {
    %c0_i32 = arith.constant 0 : i32
    %c0_i32_0 = arith.constant 0 : i32
    %c0_i32_1 = arith.constant 0 : i32
    return %c0_i32, %c0_i32_0 : i32, i32
  }
  func.func @transform_11(%arg0: i32, %arg1: i32) -> (i32, i32) {
    %c0_i32 = arith.constant 0 : i32
    %c0_i32_0 = arith.constant 0 : i32
    %c0_i32_1 = arith.constant 0 : i32
    return %c0_i32, %c0_i32_0 : i32, i32
  }
  func.func @transform_12(%arg0: i32, %arg1: i32) -> (i32, i32) {
    %c0_i32 = arith.constant 0 : i32
    %c0_i32_0 = arith.constant 0 : i32
    %c0_i32_1 = arith.constant 0 : i32
    return %c0_i32, %c0_i32_0 : i32, i32
  }
  func.func @transform_13(%arg0: i32, %arg1: i32) -> (i32, i32) {
    %c0_i32 = arith.constant 0 : i32
    %c0_i32_0 = arith.constant 0 : i32
    %c0_i32_1 = arith.constant 0 : i32
    return %c0_i32, %c0_i32_0 : i32, i32
  }
  func.func @transform_14(%arg0: i32, %arg1: i32) -> (i32, i32) {
    %c0_i32 = arith.constant 0 : i32
    %c0_i32_0 = arith.constant 0 : i32
    %c0_i32_1 = arith.constant 0 : i32
    return %c0_i32, %c0_i32_0 : i32, i32
  }
  func.func @transform_15(%arg0: i32, %arg1: i32) -> (i32, i32) {
    %c0_i32 = arith.constant 0 : i32
    %c0_i32_0 = arith.constant 0 : i32
    return %arg0, %c0_i32 : i32, i32
  }
}

</mosaic_0001>

<llo_original>
// kernel: tpu_custom_call.1
$region0: #{tpu_custom_call.1}
  #allocation0 [shape = 'u32[]', space=smem, size = 0x4, offset = 0x4, fixed_abs, tag = 'smem constant byte address 0x4 - core index']
  #allocation1 [shape = 'u32[144,128]{1,0:T(1,128)}', space=vmem, size = 0x12000, scoped, tag = 'internal scratch']
  #allocation2 [shape = 'f32[2,8,32]{2,1,0:T(8,128)}', space=vmem, size = 0x2000, scoped, tag = 'scratch operand']
  %s0 = inlined_call_operand.vmem [shape: bf16[2,8,64], index: 0, kind: input, shape index: {}]
  %s1 = inlined_call_operand.vmem [shape: bf16[64,32], index: 1, kind: input, shape index: {}]
  %s2 = inlined_call_operand.vmem [shape: f32[1,32], index: 2, kind: input, shape index: {}]
  %s3 = inlined_call_operand.vmem [shape: bf16[2,32,96], index: 3, kind: input, shape index: {}]
  %s4 = inlined_call_operand.vmem [shape: bf16[2,32,32], index: 4, kind: input, shape index: {}]
  %s5 = inlined_call_operand.vmem [shape: bf16[2,32,128], index: 5, kind: input, shape index: {}]
  %s6 = inlined_call_operand.vmem [shape: bf16[2,128,32], index: 6, kind: input, shape index: {}]
  %s7 = inlined_call_operand.vmem [shape: f32[2,9,32], index: 7, kind: input, shape index: {}]
  %s8 = inlined_call_operand.vmem [shape: f32[2,1,128], index: 8, kind: input, shape index: {}]
  %s9 = inlined_call_operand.vmem [shape: f32[1,32], index: 9, kind: input, shape index: {}]
  %s10 = inlined_call_operand.vmem [shape: f32[1,32], index: 10, kind: input, shape index: {}]
  %s11 = inlined_call_operand.vmem [shape: f32[1,32], index: 11, kind: input, shape index: {}]
  %s12 = inlined_call_operand.vmem [shape: f32[1,32], index: 12, kind: input, shape index: {}]
  %s13 = inlined_call_operand.vmem [shape: f32[32,8], index: 13, kind: input, shape index: {}]
  %s14 = inlined_call_operand.vmem [shape: f32[1,8], index: 14, kind: input, shape index: {}]
  %s15 = inlined_call_operand.hbm [shape: f32[2,8], index: 15, kind: output, shape index: {}]
  %s16 = sld [smem:[#allocation0]]
  $region101: #{tpu_custom_call.1} parent=0
    _
  %s18 = ssub.s32 1, %s16
  %s19 = scalar_select 0, %s18, %s16
  $region1: #{tpu_custom_call.1} parent=0
    #allocation3 [shape = 'u8[1024]{0}', space=vmem, size = 0x400, scoped, tag = 'output window, operand 0, single buffered']
    #allocation4 [shape = 's32[2]{0}', space=sflag, size = 0x8, scoped, tag = 'scoped memory for tpu_custom_call.1']
    %20 = vsyncpa [#allocation4], 0
    loop: start=0, step=1, limit=4
    $region2: #{tpu_custom_call.1} parent=1 // loop_pre_header
      _
    $region3: #{tpu_custom_call.1} parent=1 // loop_header
      %s22 = sphi 0, %s26
      %p23 = scmp.ge.s32.totalorder %s22, 4
      %s29 = sphi 0, %s41
      %s30 = sphi 0, %s37
      %s31 = sphi 0, %s29
      %s32 = sphi 0, %s30
      %s33 = sphi 0, %s31
      %s34 = sphi 0, %s32
      %s44 = sphi 0, %s46
      %s47 = sphi 0, %s44
      %s48 = sphi 0, %s47
      %s64 = sphi 0, %s48
      %s68 = sphi 0, %s68
      %s70 = sphi 0, %s68
      %s71 = sphi 0, %s70
      %s85 = sphi 0, %s71
      %s89 = sphi 0, %s89
      %s91 = sphi 0, %s89
      %s92 = sphi 0, %s91
      %s106 = sphi 0, %s92
      %s112 = sphi 0, %s114
      %s115 = sphi 0, %s112
      %s116 = sphi 0, %s115
      %s132 = sphi 0, %s116
      %s138 = sphi 0, %s140
      %s141 = sphi 0, %s138
      %s142 = sphi 0, %s141
      %s158 = sphi 0, %s142
      %s164 = sphi 0, %s166
      %s167 = sphi 0, %s164
      %s168 = sphi 0, %s167
      %s184 = sphi 0, %s168
      %s190 = sphi 0, %s192
      %s193 = sphi 0, %s190
      %s194 = sphi 0, %s193
      %s210 = sphi 0, %s194
      %s216 = sphi 0, %s218
      %s219 = sphi 0, %s216
      %s220 = sphi 0, %s219
      %s236 = sphi 0, %s220
      %s242 = sphi 0, %s244
      %s245 = sphi 0, %s242
      %s246 = sphi 0, %s245
      %s262 = sphi 0, %s246
      %s266 = sphi 0, %s266
      %s268 = sphi 0, %s266
      %s269 = sphi 0, %s268
      %s283 = sphi 0, %s269
      %s287 = sphi 0, %s287
      %s289 = sphi 0, %s287
      %s290 = sphi 0, %s289
      %s304 = sphi 0, %s290
      %s308 = sphi 0, %s308
      %s310 = sphi 0, %s308
      %s311 = sphi 0, %s310
      %s325 = sphi 0, %s311
      %s329 = sphi 0, %s329
      %s331 = sphi 0, %s329
      %s332 = sphi 0, %s331
      %s346 = sphi 0, %s332
      %s350 = sphi 0, %s350
      %s352 = sphi 0, %s350
      %s353 = sphi 0, %s352
      %s367 = sphi 0, %s353
      %s371 = sphi 0, %s371
      %s373 = sphi 0, %s371
      %s374 = sphi 0, %s373
      %s388 = sphi 0, %s374
      %s394 = sphi 0, %s396
      %s397 = sphi 0, %s394
      %s398 = sphi 0, %s397
      %s414 = sphi 0, %s398
    $region4: #{tpu_custom_call.1} parent=1 // loop_header_branch
      %25 = sbr.rel (%p23) target = $region8
    $region5: #{tpu_custom_call.1} parent=1 // loop_body
      %s27 = ssub.s32 %s22, 1
      %s28 = ssub.s32 %s22, 2
      %s35 = sadd.s32 1, %s30
      %p36 = scmp.ge.s32.totalorder %s35, 2
      %s37 = scalar_select %p36, 0, %s35
      %s38 = sadd.s32 1, %s29
      %s39 = scalar_select %p36, %s38, %s29
      %p40 = scmp.ge.s32.totalorder %s39, 1
      %s41 = scalar_select %p40, 0, %s39
      %s42 = ssub.s32 %s29, %s41
      %p43 = scmp.eq.s32.totalorder %s42, 0
      %s45 = sadd.s32 %s44, 1
      %s46 = scalar_select %p43, %s44, %s45
      %p49 = pneg %p43
      %p50 = scmp.eq.s32.totalorder %s22, 1
      %p51 = por %p49, %p50
      %p52 = scmp.ne.s32.totalorder %s44, %s47
      %p53 = scmp.eq.s32.totalorder %s22, 0
      %p54 = por %p52, %p53
      %p55 = scmp.ne.s32.totalorder %s44, %s47
      %p56 = scmp.eq.s32.totalorder %s27, 1
      %p57 = por %p55, %p56
      %p58 = scmp.ne.s32.totalorder %s47, %s48
      %p59 = scmp.eq.s32.totalorder %s27, 0
      %p60 = por %p58, %p59
      %p61 = scmp.ne.s32.totalorder %s47, %s48
      %p62 = scmp.eq.s32.totalorder %s28, 1
      %p63 = por %p61, %p62
      %p65 = scmp.ne.s32.totalorder %s48, %s64
      %p66 = scmp.eq.s32.totalorder %s28, 0
      %p67 = por %p65, %p66
      %s69 = sadd.s32 %s68, 1
      %p72 = scmp.eq.s32.totalorder %s22, 1
      %p73 = scmp.ne.s32.totalorder %s68, %s70
      %p74 = scmp.eq.s32.totalorder %s22, 0
      %p75 = por %p73, %p74
      %p76 = scmp.ne.s32.totalorder %s68, %s70
      %p77 = scmp.eq.s32.totalorder %s27, 1
      %p78 = por %p76, %p77
      %p79 = scmp.ne.s32.totalorder %s70, %s71
      %p80 = scmp.eq.s32.totalorder %s27, 0
      %p81 = por %p79, %p80
      %p82 = scmp.ne.s32.totalorder %s70, %s71
      %p83 = scmp.eq.s32.totalorder %s28, 1
      %p84 = por %p82, %p83
      %p86 = scmp.ne.s32.totalorder %s71, %s85
      %p87 = scmp.eq.s32.totalorder %s28, 0
      %p88 = por %p86, %p87
      %s90 = sadd.s32 %s89, 1
      %p93 = scmp.eq.s32.totalorder %s22, 1
      %p94 = scmp.ne.s32.totalorder %s89, %s91
      %p95 = scmp.eq.s32.totalorder %s22, 0
      %p96 = por %p94, %p95
      %p97 = scmp.ne.s32.totalorder %s89, %s91
      %p98 = scmp.eq.s32.totalorder %s27, 1
      %p99 = por %p97, %p98
      %p100 = scmp.ne.s32.totalorder %s91, %s92
      %p101 = scmp.eq.s32.totalorder %s27, 0
      %p102 = por %p100, %p101
      %p103 = scmp.ne.s32.totalorder %s91, %s92
      %p104 = scmp.eq.s32.totalorder %s28, 1
      %p105 = por %p103, %p104
      %p107 = scmp.ne.s32.totalorder %s92, %s106
      %p108 = scmp.eq.s32.totalorder %s28, 0
      %p109 = por %p107, %p108
      %s110 = ssub.s32 %s30, %s37
      %p111 = scmp.eq.s32.totalorder %s110, 0
      %s113 = sadd.s32 %s112, 1
      %s114 = scalar_select %p111, %s112, %s113
      %p117 = pneg %p111
      %p118 = scmp.eq.s32.totalorder %s22, 1
      %p119 = por %p117, %p118
      %p120 = scmp.ne.s32.totalorder %s112, %s115
      %p121 = scmp.eq.s32.totalorder %s22, 0
      %p122 = por %p120, %p121
      %p123 = scmp.ne.s32.totalorder %s112, %s115
      %p124 = scmp.eq.s32.totalorder %s27, 1
      %p125 = por %p123, %p124
      %p126 = scmp.ne.s32.totalorder %s115, %s116
      %p127 = scmp.eq.s32.totalorder %s27, 0
      %p128 = por %p126, %p127
      %p129 = scmp.ne.s32.totalorder %s115, %s116
      %p130 = scmp.eq.s32.totalorder %s28, 1
      %p131 = por %p129, %p130
      %p133 = scmp.ne.s32.totalorder %s116, %s132
      %p134 = scmp.eq.s32.totalorder %s28, 0
      %p135 = por %p133, %p134
      %s136 = ssub.s32 %s30, %s37
      %p137 = scmp.eq.s32.totalorder %s136, 0
      %s139 = sadd.s32 %s138, 1
      %s140 = scalar_select %p137, %s138, %s139
      %p143 = pneg %p137
      %p144 = scmp.eq.s32.totalorder %s22, 1
      %p145 = por %p143, %p144
      %p146 = scmp.ne.s32.totalorder %s138, %s141
      %p147 = scmp.eq.s32.totalorder %s22, 0
      %p148 = por %p146, %p147
      %p149 = scmp.ne.s32.totalorder %s138, %s141
      %p150 = scmp.eq.s32.totalorder %s27, 1
      %p151 = por %p149, %p150
      %p152 = scmp.ne.s32.totalorder %s141, %s142
      %p153 = scmp.eq.s32.totalorder %s27, 0
      %p154 = por %p152, %p153
      %p155 = scmp.ne.s32.totalorder %s141, %s142
      %p156 = scmp.eq.s32.totalorder %s28, 1
      %p157 = por %p155, %p156
      %p159 = scmp.ne.s32.totalorder %s142, %s158
      %p160 = scmp.eq.s32.totalorder %s28, 0
      %p161 = por %p159, %p160
      %s162 = ssub.s32 %s30, %s37
      %p163 = scmp.eq.s32.totalorder %s162, 0
      %s165 = sadd.s32 %s164, 1
      %s166 = scalar_select %p163, %s164, %s165
      %p169 = pneg %p163
      %p170 = scmp.eq.s32.totalorder %s22, 1
      %p171 = por %p169, %p170
      %p172 = scmp.ne.s32.totalorder %s164, %s167
      %p173 = scmp.eq.s32.totalorder %s22, 0
      %p174 = por %p172, %p173
      %p175 = scmp.ne.s32.totalorder %s164, %s167
      %p176 = scmp.eq.s32.totalorder %s27, 1
      %p177 = por %p175, %p176
      %p178 = scmp.ne.s32.totalorder %s167, %s168
      %p179 = scmp.eq.s32.totalorder %s27, 0
      %p180 = por %p178, %p179
      %p181 = scmp.ne.s32.totalorder %s167, %s168
      %p182 = scmp.eq.s32.totalorder %s28, 1
      %p183 = por %p181, %p182
      %p185 = scmp.ne.s32.totalorder %s168, %s184
      %p186 = scmp.eq.s32.totalorder %s28, 0
      %p187 = por %p185, %p186
      %s188 = ssub.s32 %s30, %s37
      %p189 = scmp.eq.s32.totalorder %s188, 0
      %s191 = sadd.s32 %s190, 1
      %s192 = scalar_select %p189, %s190, %s191
      %p195 = pneg %p189
      %p196 = scmp.eq.s32.totalorder %s22, 1
      %p197 = por %p195, %p196
      %p198 = scmp.ne.s32.totalorder %s190, %s193
      %p199 = scmp.eq.s32.totalorder %s22, 0
      %p200 = por %p198, %p199
      %p201 = scmp.ne.s32.totalorder %s190, %s193
      %p202 = scmp.eq.s32.totalorder %s27, 1
      %p203 = por %p201, %p202
      %p204 = scmp.ne.s32.totalorder %s193, %s194
      %p205 = scmp.eq.s32.totalorder %s27, 0
      %p206 = por %p204, %p205
      %p207 = scmp.ne.s32.totalorder %s193, %s194
      %p208 = scmp.eq.s32.totalorder %s28, 1
      %p209 = por %p207, %p208
      %p211 = scmp.ne.s32.totalorder %s194, %s210
      %p212 = scmp.eq.s32.totalorder %s28, 0
      %p213 = por %p211, %p212
      %s214 = ssub.s32 %s30, %s37
      %p215 = scmp.eq.s32.totalorder %s214, 0
      %s217 = sadd.s32 %s216, 1
      %s218 = scalar_select %p215, %s216, %s217
      %p221 = pneg %p215
      %p222 = scmp.eq.s32.totalorder %s22, 1
      %p223 = por %p221, %p222
      %p224 = scmp.ne.s32.totalorder %s216, %s219
      %p225 = scmp.eq.s32.totalorder %s22, 0
      %p226 = por %p224, %p225
      %p227 = scmp.ne.s32.totalorder %s216, %s219
      %p228 = scmp.eq.s32.totalorder %s27, 1
      %p229 = por %p227, %p228
      %p230 = scmp.ne.s32.totalorder %s219, %s220
      %p231 = scmp.eq.s32.totalorder %s27, 0
      %p232 = por %p230, %p231
      %p233 = scmp.ne.s32.totalorder %s219, %s220
      %p234 = scmp.eq.s32.totalorder %s28, 1
      %p235 = por %p233, %p234
      %p237 = scmp.ne.s32.totalorder %s220, %s236
      %p238 = scmp.eq.s32.totalorder %s28, 0
      %p239 = por %p237, %p238
      %s240 = ssub.s32 %s30, %s37
      %p241 = scmp.eq.s32.totalorder %s240, 0
      %s243 = sadd.s32 %s242, 1
      %s244 = scalar_select %p241, %s242, %s243
      %p247 = pneg %p241
      %p248 = scmp.eq.s32.totalorder %s22, 1
      %p249 = por %p247, %p248
      %p250 = scmp.ne.s32.totalorder %s242, %s245
      %p251 = scmp.eq.s32.totalorder %s22, 0
      %p252 = por %p250, %p251
      %p253 = scmp.ne.s32.totalorder %s242, %s245
      %p254 = scmp.eq.s32.totalorder %s27, 1
      %p255 = por %p253, %p254
      %p256 = scmp.ne.s32.totalorder %s245, %s246
      %p257 = scmp.eq.s32.totalorder %s27, 0
      %p258 = por %p256, %p257
      %p259 = scmp.ne.s32.totalorder %s245, %s246
      %p260 = scmp.eq.s32.totalorder %s28, 1
      %p261 = por %p259, %p260
      %p263 = scmp.ne.s32.totalorder %s246, %s262
      %p264 = scmp.eq.s32.totalorder %s28, 0
      %p265 = por %p263, %p264
      %s267 = sadd.s32 %s266, 1
      %p270 = scmp.eq.s32.totalorder %s22, 1
      %p271 = scmp.ne.s32.totalorder %s266, %s268
      %p272 = scmp.eq.s32.totalorder %s22, 0
      %p273 = por %p271, %p272
      %p274 = scmp.ne.s32.totalorder %s266, %s268
      %p275 = scmp.eq.s32.totalorder %s27, 1
      %p276 = por %p274, %p275
      %p277 = scmp.ne.s32.totalorder %s268, %s269
      %p278 = scmp.eq.s32.totalorder %s27, 0
      %p279 = por %p277, %p278
      %p280 = scmp.ne.s32.totalorder %s268, %s269
      %p281 = scmp.eq.s32.totalorder %s28, 1
      %p282 = por %p280, %p281
      %p284 = scmp.ne.s32.totalorder %s269, %s283
      %p285 = scmp.eq.s32.totalorder %s28, 0
      %p286 = por %p284, %p285
      %s288 = sadd.s32 %s287, 1
      %p291 = scmp.eq.s32.totalorder %s22, 1
      %p292 = scmp.ne.s32.totalorder %s287, %s289
      %p293 = scmp.eq.s32.totalorder %s22, 0
      %p294 = por %p292, %p293
      %p295 = scmp.ne.s32.totalorder %s287, %s289
      %p296 = scmp.eq.s32.totalorder %s27, 1
      %p297 = por %p295, %p296
      %p298 = scmp.ne.s32.totalorder %s289, %s290
      %p299 = scmp.eq.s32.totalorder %s27, 0
      %p300 = por %p298, %p299
      %p301 = scmp.ne.s32.totalorder %s289, %s290
      %p302 = scmp.eq.s32.totalorder %s28, 1
      %p303 = por %p301, %p302
      %p305 = scmp.ne.s32.totalorder %s290, %s304
      %p306 = scmp.eq.s32.totalorder %s28, 0
      %p307 = por %p305, %p306
      %s309 = sadd.s32 %s308, 1
      %p312 = scmp.eq.s32.totalorder %s22, 1
      %p313 = scmp.ne.s32.totalorder %s308, %s310
      %p314 = scmp.eq.s32.totalorder %s22, 0
      %p315 = por %p313, %p314
      %p316 = scmp.ne.s32.totalorder %s308, %s310
      %p317 = scmp.eq.s32.totalorder %s27, 1
      %p318 = por %p316, %p317
      %p319 = scmp.ne.s32.totalorder %s310, %s311
      %p320 = scmp.eq.s32.totalorder %s27, 0
      %p321 = por %p319, %p320
      %p322 = scmp.ne.s32.totalorder %s310, %s311
      %p323 = scmp.eq.s32.totalorder %s28, 1
      %p324 = por %p322, %p323
      %p326 = scmp.ne.s32.totalorder %s311, %s325
      %p327 = scmp.eq.s32.totalorder %s28, 0
      %p328 = por %p326, %p327
      %s330 = sadd.s32 %s329, 1
      %p333 = scmp.eq.s32.totalorder %s22, 1
      %p334 = scmp.ne.s32.totalorder %s329, %s331
      %p335 = scmp.eq.s32.totalorder %s22, 0
      %p336 = por %p334, %p335
      %p337 = scmp.ne.s32.totalorder %s329, %s331
      %p338 = scmp.eq.s32.totalorder %s27, 1
      %p339 = por %p337, %p338
      %p340 = scmp.ne.s32.totalorder %s331, %s332
      %p341 = scmp.eq.s32.totalorder %s27, 0
      %p342 = por %p340, %p341
      %p343 = scmp.ne.s32.totalorder %s331, %s332
      %p344 = scmp.eq.s32.totalorder %s28, 1
      %p345 = por %p343, %p344
      %p347 = scmp.ne.s32.totalorder %s332, %s346
      %p348 = scmp.eq.s32.totalorder %s28, 0
      %p349 = por %p347, %p348
      %s351 = sadd.s32 %s350, 1
      %p354 = scmp.eq.s32.totalorder %s22, 1
      %p355 = scmp.ne.s32.totalorder %s350, %s352
      %p356 = scmp.eq.s32.totalorder %s22, 0
      %p357 = por %p355, %p356
      %p358 = scmp.ne.s32.totalorder %s350, %s352
      %p359 = scmp.eq.s32.totalorder %s27, 1
      %p360 = por %p358, %p359
      %p361 = scmp.ne.s32.totalorder %s352, %s353
      %p362 = scmp.eq.s32.totalorder %s27, 0
      %p363 = por %p361, %p362
      %p364 = scmp.ne.s32.totalorder %s352, %s353
      %p365 = scmp.eq.s32.totalorder %s28, 1
      %p366 = por %p364, %p365
      %p368 = scmp.ne.s32.totalorder %s353, %s367
      %p369 = scmp.eq.s32.totalorder %s28, 0
      %p370 = por %p368, %p369
      %s372 = sadd.s32 %s371, 1
      %p375 = scmp.eq.s32.totalorder %s22, 1
      %p376 = scmp.ne.s32.totalorder %s371, %s373
      %p377 = scmp.eq.s32.totalorder %s22, 0
      %p378 = por %p376, %p377
      %p379 = scmp.ne.s32.totalorder %s371, %s373
      %p380 = scmp.eq.s32.totalorder %s27, 1
      %p381 = por %p379, %p380
      %p382 = scmp.ne.s32.totalorder %s373, %s374
      %p383 = scmp.eq.s32.totalorder %s27, 0
      %p384 = por %p382, %p383
      %p385 = scmp.ne.s32.totalorder %s373, %s374
      %p386 = scmp.eq.s32.totalorder %s28, 1
      %p387 = por %p385, %p386
      %p389 = scmp.ne.s32.totalorder %s374, %s388
      %p390 = scmp.eq.s32.totalorder %s28, 0
      %p391 = por %p389, %p390
      %s392 = ssub.s32 %s29, %s41
      %p393 = scmp.eq.s32.totalorder %s392, 0
      %s395 = sadd.s32 %s394, 1
      %s396 = scalar_select %p393, %s394, %s395
      %p399 = pneg %p393
      %p400 = scmp.eq.s32.totalorder %s22, 1
      %p401 = por %p399, %p400
      %p402 = scmp.ne.s32.totalorder %s394, %s397
      %p403 = scmp.eq.s32.totalorder %s22, 0
      %p404 = por %p402, %p403
      %p405 = scmp.ne.s32.totalorder %s394, %s397
      %p406 = scmp.eq.s32.totalorder %s27, 1
      %p407 = por %p405, %p406
      %p408 = scmp.ne.s32.totalorder %s397, %s398
      %p409 = scmp.eq.s32.totalorder %s27, 0
      %p410 = por %p408, %p409
      %p411 = scmp.ne.s32.totalorder %s397, %s398
      %p412 = scmp.eq.s32.totalorder %s28, 1
      %p413 = por %p411, %p412
      %p415 = scmp.ne.s32.totalorder %s398, %s414
      %p416 = scmp.eq.s32.totalorder %s28, 0
      %p417 = por %p415, %p416
      %p418 = scmp.le.s32.totalorder 1, %s22
      %p419 = scmp.lt.s32.totalorder %s22, 3
      %p420 = pnand %p418, %p419
      %p421 = pneg %p420
      // Predicated region
      $region9: #{tpu_custom_call.1} parent=5 // pred_check
        _
      $region10: #{tpu_custom_call.1} parent=5 // pred_check_branch
        %423 = sbr.rel (%p420) target = $region12
      $region11: #{tpu_custom_call.1} parent=5 // pred_region
        %s424 = ssub.s32 %s22, 1
        // Predicated region
        $region13: #{tpu_custom_call.1} parent=11 // pred_check
          %p425 = pneg %p60
        $region14: #{tpu_custom_call.1} parent=11 // pred_check_branch
          %427 = sbr.rel (%p425) target = $region16
        $region15: #{tpu_custom_call.1} parent=11 // pred_region
          %s428 = smul.u32 2, %s31
          %p429 = scmp.lt.s32.totalorder %s428, 1
          %s430 = scalar_select %p429, %s428, 1
          %s431 = smul.addr %s430, 4
          %s432 = scalar_lea.vmem %s0, %s431
          %s433 = smul.u32 2, %s31
        $region16: #{tpu_custom_call.1} parent=11 // pred_fallthru
          _
        // Predicated region
        $region17: #{tpu_custom_call.1} parent=11 // pred_check
          %p434 = pneg %p81
        $region18: #{tpu_custom_call.1} parent=11 // pred_check_branch
          %436 = sbr.rel (%p434) target = $region20
        $region19: #{tpu_custom_call.1} parent=11 // pred_region
          _
        $region20: #{tpu_custom_call.1} parent=11 // pred_fallthru
          _
        // Predicated region
        $region21: #{tpu_custom_call.1} parent=11 // pred_check
          %p437 = pneg %p102
        $region22: #{tpu_custom_call.1} parent=11 // pred_check_branch
          %439 = sbr.rel (%p437) target = $region24
        $region23: #{tpu_custom_call.1} parent=11 // pred_region
          _
        $region24: #{tpu_custom_call.1} parent=11 // pred_fallthru
          _
        // Predicated region
        $region25: #{tpu_custom_call.1} parent=11 // pred_check
          %p440 = pneg %p279
        $region26: #{tpu_custom_call.1} parent=11 // pred_check_branch
          %442 = sbr.rel (%p440) target = $region28
        $region27: #{tpu_custom_call.1} parent=11 // pred_region
          _
        $region28: #{tpu_custom_call.1} parent=11 // pred_fallthru
          _
        // Predicated region
        $region29: #{tpu_custom_call.1} parent=11 // pred_check
          %p443 = pneg %p300
        $region30: #{tpu_custom_call.1} parent=11 // pred_check_branch
          %445 = sbr.rel (%p443) target = $region32
        $region31: #{tpu_custom_call.1} parent=11 // pred_region
          _
        $region32: #{tpu_custom_call.1} parent=11 // pred_fallthru
          _
        // Predicated region
        $region33: #{tpu_custom_call.1} parent=11 // pred_check
          %p446 = pneg %p321
        $region34: #{tpu_custom_call.1} parent=11 // pred_check_branch
          %448 = sbr.rel (%p446) target = $region36
        $region35: #{tpu_custom_call.1} parent=11 // pred_region
          _
        $region36: #{tpu_custom_call.1} parent=11 // pred_fallthru
          _
        // Predicated region
        $region37: #{tpu_custom_call.1} parent=11 // pred_check
          %p449 = pneg %p342
        $region38: #{tpu_custom_call.1} parent=11 // pred_check_branch
          %451 = sbr.rel (%p449) target = $region40
        $region39: #{tpu_custom_call.1} parent=11 // pred_region
          _
        $region40: #{tpu_custom_call.1} parent=11 // pred_fallthru
          _
        // Predicated region
        $region41: #{tpu_custom_call.1} parent=11 // pred_check
          %p452 = pneg %p363
        $region42: #{tpu_custom_call.1} parent=11 // pred_check_branch
          %454 = sbr.rel (%p452) target = $region44
        $region43: #{tpu_custom_call.1} parent=11 // pred_region
          _
        $region44: #{tpu_custom_call.1} parent=11 // pred_fallthru
          _
        // Predicated region
        $region45: #{tpu_custom_call.1} parent=11 // pred_check
          %p455 = pneg %p384
        $region46: #{tpu_custom_call.1} parent=11 // pred_check_branch
          %457 = sbr.rel (%p455) target = $region48
        $region47: #{tpu_custom_call.1} parent=11 // pred_region
          _
        $region48: #{tpu_custom_call.1} parent=11 // pred_fallthru
          _
      $region12: #{tpu_custom_call.1} parent=5 // pred_fallthru
        _
      %p458 = scmp.lt.s32.totalorder %s22, 2
      // Predicated region
      $region49: #{tpu_custom_call.1} parent=5 // pred_check
        %p459 = pneg %p458
      $region50: #{tpu_custom_call.1} parent=5 // pred_check_branch
        %461 = sbr.rel (%p459) target = $region52
      $region51: #{tpu_custom_call.1} parent=5 // pred_region
        // Predicated region
        $region53: #{tpu_custom_call.1} parent=51 // pred_check
          %p462 = pneg %p122
        $region54: #{tpu_custom_call.1} parent=51 // pred_check_branch
          %464 = sbr.rel (%p462) target = $region56
        $region55: #{tpu_custom_call.1} parent=51 // pred_region
          %p465 = scmp.lt.s32.totalorder %s30, 1
          %s466 = scalar_select %p465, %s30, 1
          %s467 = smul.addr %s466, 4
          %s468 = smul.addr %s467, 4
          %s469 = scalar_lea.vmem %s3, %s468
        $region56: #{tpu_custom_call.1} parent=51 // pred_fallthru
          _
        // Predicated region
        $region57: #{tpu_custom_call.1} parent=51 // pred_check
          %p470 = pneg %p148
        $region58: #{tpu_custom_call.1} parent=51 // pred_check_branch
          %472 = sbr.rel (%p470) target = $region60
        $region59: #{tpu_custom_call.1} parent=51 // pred_region
          %p473 = scmp.lt.s32.totalorder %s30, 1
          %s474 = scalar_select %p473, %s30, 1
          %s475 = smul.addr %s474, 4
          %s476 = smul.addr %s475, 4
          %s477 = scalar_lea.vmem %s4, %s476
        $region60: #{tpu_custom_call.1} parent=51 // pred_fallthru
          _
        // Predicated region
        $region61: #{tpu_custom_call.1} parent=51 // pred_check
          %p478 = pneg %p174
        $region62: #{tpu_custom_call.1} parent=51 // pred_check_branch
          %480 = sbr.rel (%p478) target = $region64
        $region63: #{tpu_custom_call.1} parent=51 // pred_region
          %p481 = scmp.lt.s32.totalorder %s30, 1
          %s482 = scalar_select %p481, %s30, 1
          %s483 = smul.addr %s482, 4
          %s484 = smul.addr %s483, 4
          %s485 = scalar_lea.vmem %s5, %s484
        $region64: #{tpu_custom_call.1} parent=51 // pred_fallthru
          _
        // Predicated region
        $region65: #{tpu_custom_call.1} parent=51 // pred_check
          %p486 = pneg %p200
        $region66: #{tpu_custom_call.1} parent=51 // pred_check_branch
          %488 = sbr.rel (%p486) target = $region68
        $region67: #{tpu_custom_call.1} parent=51 // pred_region
          %p489 = scmp.lt.s32.totalorder %s30, 1
          %s490 = scalar_select %p489, %s30, 1
          %s491 = smul.addr %s490, 16
          %s492 = smul.addr %s491, 4
          %s493 = scalar_lea.vmem %s6, %s492
        $region68: #{tpu_custom_call.1} parent=51 // pred_fallthru
          _
        // Predicated region
        $region69: #{tpu_custom_call.1} parent=51 // pred_check
          %p494 = pneg %p226
        $region70: #{tpu_custom_call.1} parent=51 // pred_check_branch
          %496 = sbr.rel (%p494) target = $region72
        $region71: #{tpu_custom_call.1} parent=51 // pred_region
          %p497 = scmp.lt.s32.totalorder %s30, 1
          %s498 = scalar_select %p497, %s30, 1
          %s499 = smul.addr %s498, 2
          %s500 = smul.addr %s499, 8
          %s501 = scalar_lea.vmem %s7, %s500
        $region72: #{tpu_custom_call.1} parent=51 // pred_fallthru
          _
        // Predicated region
        $region73: #{tpu_custom_call.1} parent=51 // pred_check
          %p502 = pneg %p252
        $region74: #{tpu_custom_call.1} parent=51 // pred_check_branch
          %504 = sbr.rel (%p502) target = $region76
        $region75: #{tpu_custom_call.1} parent=51 // pred_region
          %p505 = scmp.lt.s32.totalorder %s30, 1
          %s506 = scalar_select %p505, %s30, 1
          %s507 = scalar_lea.vmem %s8, %s506
        $region76: #{tpu_custom_call.1} parent=51 // pred_fallthru
          _
      $region52: #{tpu_custom_call.1} parent=5 // pred_fallthru
        _
      %p508 = scmp.le.s32.totalorder 1, %s22
      %p509 = scmp.lt.s32.totalorder %s22, 3
      %p510 = pnand %p508, %p509
      %p511 = pneg %p510
      // Predicated region
      $region77: #{tpu_custom_call.1} parent=5 // pred_check
        _
      $region78: #{tpu_custom_call.1} parent=5 // pred_check_branch
        %513 = sbr.rel (%p510) target = $region80
      $region79: #{tpu_custom_call.1} parent=5 // pred_region
        %s514 = ssub.s32 %s22, 1
        %s515 = smul.u32 2, %s31
        %p516 = scmp.lt.s32.totalorder %s515, 1
        %s517 = scalar_select %p516, %s515, 1
        %s518 = smul.addr %s517, 4
        %s519 = scalar_lea.vmem %s0, %s518
        %p520 = pneg %p60
        %p521 = pneg %p57
        %p522 = pneg %p81
        %p523 = pneg %p78
        %p524 = pneg %p102
        %p525 = pneg %p99
        %p526 = scmp.lt.s32.totalorder %s32, 1
        %s527 = scalar_select %p526, %s32, 1
        %s528 = smul.addr %s527, 4
        %s529 = smul.addr %s528, 4
        %s530 = scalar_lea.vmem %s3, %s529
        %p531 = pneg %p128
        %p532 = pneg %p125
        %p533 = scmp.lt.s32.totalorder %s32, 1
        %s534 = scalar_select %p533, %s32, 1
        %s535 = smul.addr %s534, 4
        %s536 = smul.addr %s535, 4
        %s537 = scalar_lea.vmem %s4, %s536
        %p538 = pneg %p154
        %p539 = pneg %p151
        %p540 = scmp.lt.s32.totalorder %s32, 1
        %s541 = scalar_select %p540, %s32, 1
        %s542 = smul.addr %s541, 4
        %s543 = smul.addr %s542, 4
        %s544 = scalar_lea.vmem %s5, %s543
        %p545 = pneg %p180
        %p546 = pneg %p177
        %p547 = scmp.lt.s32.totalorder %s32, 1
        %s548 = scalar_select %p547, %s32, 1
        %s549 = smul.addr %s548, 16
        %s550 = smul.addr %s549, 4
        %s551 = scalar_lea.vmem %s6, %s550
        %p552 = pneg %p206
        %p553 = pneg %p203
        %p554 = scmp.lt.s32.totalorder %s32, 1
        %s555 = scalar_select %p554, %s32, 1
        %s556 = smul.addr %s555, 2
        %s557 = smul.addr %s556, 8
        %s558 = scalar_lea.vmem %s7, %s557
        %p559 = pneg %p232
        %p560 = pneg %p229
        %p561 = scmp.lt.s32.totalorder %s32, 1
        %s562 = scalar_select %p561, %s32, 1
        %s563 = scalar_lea.vmem %s8, %s562
        %p564 = pneg %p258
        %p565 = pneg %p255
        %p566 = pneg %p279
        %p567 = pneg %p276
        %p568 = pneg %p300
        %p569 = pneg %p297
        %p570 = pneg %p321
        %p571 = pneg %p318
        %p572 = pneg %p342
        %p573 = pneg %p339
        %p574 = pneg %p363
        %p575 = pneg %p360
        %p576 = pneg %p384
        %p577 = pneg %p381
        %p578 = pneg %p410
        %p579 = pneg %p407
        %s580 = smul.u32 2, %s31
        %p581 = scmp.lt.s32.totalorder %s580, 1
        %s582 = scalar_select %p581, %s580, 1
        %s583 = smul.addr %s582, 4
        %s584 = scalar_lea.vmem %s0, %s583
        %s585 = smul.u32 2, %s31
        %p586 = scmp.lt.s32.totalorder %s32, 1
        %s587 = scalar_select %p586, %s32, 1
        %s588 = smul.addr %s587, 4
        %s589 = smul.addr %s588, 4
        %s590 = scalar_lea.vmem %s3, %s589
        %p591 = scmp.lt.s32.totalorder %s32, 1
        %s592 = scalar_select %p591, %s32, 1
        %s593 = smul.addr %s592, 4
        %s594 = smul.addr %s593, 4
        %s595 = scalar_lea.vmem %s4, %s594
        %p596 = scmp.lt.s32.totalorder %s32, 1
        %s597 = scalar_select %p596, %s32, 1
        %s598 = smul.addr %s597, 4
        %s599 = smul.addr %s598, 4
        %s600 = scalar_lea.vmem %s5, %s599
        %p601 = scmp.lt.s32.totalorder %s32, 1
        %s602 = scalar_select %p601, %s32, 1
        %s603 = smul.addr %s602, 16
        %s604 = smul.addr %s603, 4
        %s605 = scalar_lea.vmem %s6, %s604
        %p606 = scmp.lt.s32.totalorder %s32, 1
        %s607 = scalar_select %p606, %s32, 1
        %s608 = smul.addr %s607, 2
        %s609 = smul.addr %s608, 8
        %s610 = scalar_lea.vmem %s7, %s609
        %p611 = scmp.lt.s32.totalorder %s32, 1
        %s612 = scalar_select %p611, %s32, 1
        %s613 = scalar_lea.vmem %s8, %s612
        %p615 = scmp.eq.s32.totalorder %s32, 0
        // Predicated region
        $region81: #{tpu_custom_call.1} parent=79 // pred_check
          %p616 = pneg %p615
        $region82: #{tpu_custom_call.1} parent=79 // pred_check_branch
          %618 = sbr.rel (%p616) target = $region84
        $region83: #{tpu_custom_call.1} parent=79 // pred_region
          %v619 = vld [vmem:[%s584] sm:$0xf]
          %v620 = vld [vmem:[%s584 + $0x4] sm:$0xf]
          %v621 = vld [vmem:[%s1] sm:$0xf]
          %v622 = vld [vmem:[%s1 + $0x4] sm:$0xf]
          %v623 = vld [vmem:[%s1 + $0x8] sm:$0xf]
          %v624 = vld [vmem:[%s1 + $0xc] sm:$0xf]
          %v625 = vld [vmem:[%s1 + $0x10] sm:$0xf]
          %v626 = vld [vmem:[%s1 + $0x14] sm:$0xf]
          %v627 = vld [vmem:[%s1 + $0x18] sm:$0xf]
          %v628 = vld [vmem:[%s1 + $0x1c] sm:$0xf]
          %v629 = vld [vmem:[%s2] sm:$0x1]
          %v631 = vlaneseq
          %v632 = vshrl.u32 %v631, 7
          %v633 = vsub.s32 0, %v632
          %v634 = vrot.slane %v629, %v633
          %v638 = vunpack.c.l.b16 %v619
          %v639 = vunpack.c.l.b16 %v620
          %v640 = vpack.c.b16 %v639, %v638
          %v649 = vunpack.c.l.b16 %v621
          %v650 = vunpack.c.l.b16 %v622
          %v651 = vunpack.c.l.b16 %v623
          %v652 = vunpack.c.l.b16 %v624
          %v653 = vunpack.c.l.b16 %v625
          %v654 = vunpack.c.l.b16 %v626
          %v655 = vunpack.c.l.b16 %v627
          %v656 = vunpack.c.l.b16 %v628
          %v657 = vpack.c.b16 %v650, %v649
          %v658 = vpack.c.b16 %v652, %v651
          %v659 = vpack.c.b16 %v654, %v653
          %v660 = vpack.c.b16 %v656, %v655
          %vm665 = vcmask 523264
          %v667 = vsel %vm665, %v640, 0
          %669 = vmatprep.subr.bf16.mxu0 0
          %670 = vmatpush1.bf16.msra.mxu0 %v657
          %671 = vmatprep.subr.bf16.mxu0 0
          %672 = vmatpush1.bf16.msra.mxu0 %v658
          %673 = vmatprep.subr.bf16.mxu0 0
          %674 = vmatpush1.bf16.msra.mxu0 %v659
          %675 = vmatprep.subr.bf16.mxu0 0
          %676 = vmatpush1.bf16.msra.mxu0 %v660
          %677 = vmatprep.subr.bf16.mxu0 0
          %678 = vmatpush1.bf16.msra.mxu0 0
          %679 = vmatprep.subr.bf16.mxu0 0
          %680 = vmatpush1.bf16.msra.mxu0 0
          %681 = vmatprep.subr.bf16.mxu0 0
          %682 = vmatpush1.bf16.msra.mxu0 0
          %683 = vmatprep.subr.bf16.mxu0 0
          %684 = vmatpush1.bf16.msra.mxu0 0
          %685 = vmatprep.subr.bf16.mxu0 0
          %686 = vmatpush1.bf16.msra.mxu0 0
          %687 = vmatprep.subr.bf16.mxu0 0
          %688 = vmatpush1.bf16.msra.mxu0 0
          %689 = vmatprep.subr.bf16.mxu0 0
          %690 = vmatpush1.bf16.msra.mxu0 0
          %691 = vmatprep.subr.bf16.mxu0 0
          %692 = vmatpush1.bf16.msra.mxu0 0
          %693 = vmatprep.subr.bf16.mxu0 0
          %694 = vmatpush1.bf16.msra.mxu0 0
          %695 = vmatprep.subr.bf16.mxu0 0
          %696 = vmatpush1.bf16.msra.mxu0 0
          %697 = vmatprep.subr.bf16.mxu0 0
          %698 = vmatpush1.bf16.msra.mxu0 0
          %699 = vmatprep.subr.bf16.mxu0 0
          %700 = vmatpush1.bf16.msra.mxu0 0
          %701 = vmatprep.mubr.bf16.mxu0 0
          %702 = vmatmul.mubr.bf16.gmra.mrb[0].mxu0 %v667
          %v703 = vpop.f32.mrb[0].mxu0
          %v704 = vadd.f32 %v634, %v703
          %v705 = vpop.f32.mrb[0].mxu0
          %v706 = vpop.f32.mrb[0].mxu0
          %v707 = vadd.f32 %v634, %v706
          %v708 = vpop.f32.mrb[0].mxu0
          %709 = vdwg.mxu0
          %vm710 = vcmask 261120
          %711 = vst.msk [vmem:[#allocation2] sm:$0xff] %vm710, %v704
          %712 = vst.msk [vmem:[#allocation2 + $0x8] sm:$0xff] %vm710, %v707
        $region84: #{tpu_custom_call.1} parent=79 // pred_fallthru
          _
        %v713 = vld [vmem:[#allocation2] sm:$0xff]
        %v714 = vld [vmem:[#allocation2 + $0x8] sm:$0xff]
        %v715 = vpack.c.bf16 %v714, %v713
        %v716 = vld [vmem:[%s610] sm:$0xff]
        %v717 = vld [vmem:[%s610 + $0x8] sm:$0x1]
        %v718 = vld [vmem:[%s590] sm:$0xf]
        %v719 = vld [vmem:[%s590 + $0x4] sm:$0xf]
        %v720 = vld [vmem:[%s590 + $0x8] sm:$0xf]
        %v721 = vld [vmem:[%s590 + $0xc] sm:$0xf]
        %v726 = vunpack.c.l.b16 %v718
        %v727 = vunpack.c.l.b16 %v719
        %v728 = vunpack.c.l.b16 %v720
        %v729 = vunpack.c.l.b16 %v721
        %v730 = vpack.c.b16 %v727, %v726
        %v731 = vpack.c.b16 %v729, %v728
        %vm734 = vcmask 261120
        %v736 = vsel %vm734, %v715, 0
        %738 = vmatprep.subr.bf16.mxu0 0
        %739 = vmatpush1.bf16.msra.mxu0 %v730
        %740 = vmatprep.subr.bf16.mxu0 0
        %741 = vmatpush1.bf16.msra.mxu0 %v731
        %742 = vmatprep.subr.bf16.mxu0 0
        %743 = vmatpush1.bf16.msra.mxu0 0
        %744 = vmatprep.subr.bf16.mxu0 0
        %745 = vmatpush1.bf16.msra.mxu0 0
        %746 = vmatprep.subr.bf16.mxu0 0
        %747 = vmatpush1.bf16.msra.mxu0 0
        %748 = vmatprep.subr.bf16.mxu0 0
        %749 = vmatpush1.bf16.msra.mxu0 0
        %750 = vmatprep.subr.bf16.mxu0 0
        %751 = vmatpush1.bf16.msra.mxu0 0
        %752 = vmatprep.subr.bf16.mxu0 0
        %753 = vmatpush1.bf16.msra.mxu0 0
        %754 = vmatprep.subr.bf16.mxu0 0
        %755 = vmatpush1.bf16.msra.mxu0 0
        %756 = vmatprep.subr.bf16.mxu0 0
        %757 = vmatpush1.bf16.msra.mxu0 0
        %758 = vmatprep.subr.bf16.mxu0 0
        %759 = vmatpush1.bf16.msra.mxu0 0
        %760 = vmatprep.subr.bf16.mxu0 0
        %761 = vmatpush1.bf16.msra.mxu0 0
        %762 = vmatprep.subr.bf16.mxu0 0
        %763 = vmatpush1.bf16.msra.mxu0 0
        %764 = vmatprep.subr.bf16.mxu0 0
        %765 = vmatpush1.bf16.msra.mxu0 0
        %766 = vmatprep.subr.bf16.mxu0 0
        %767 = vmatpush1.bf16.msra.mxu0 0
        %768 = vmatprep.subr.bf16.mxu0 0
        %769 = vmatpush1.bf16.msra.mxu0 0
        %770 = vmatprep.mubr.bf16.mxu0 0
        %771 = vmatmul.mubr.bf16.gmra.mrb[0].mxu0 %v736
        %v772 = vpop.f32.mrb[0].mxu0
        %v773 = vadd.f32 0.0, %v772
        %v774 = vpop.f32.mrb[0].mxu0
        %v775 = vpop.f32.mrb[0].mxu0
        %v776 = vadd.f32 0.0, %v775
        %v777 = vpop.f32.mrb[0].mxu0
        %778 = vdwg.mxu0
        %v779 = vlaneseq
        %v780 = vshrl.u32 %v779, 7
        %v781 = vsub.s32 0, %v780
        %v782 = vrot.slane %v716, %v781
        %v783 = vadd.f32 %v773, %v782
        %v784 = vadd.f32 %v776, %v782
        %v785 = vlaneseq
        %v786 = vshrl.u32 %v785, 7
        %v787 = vsub.s32 1, %v786
        %v788 = vrot.slane %v716, %v787
        %790 = vrot.lane.b32.xlu0 %v788, 32
        %v791 = vpop.permute.xlu0 %790
        %v793 = vadd.f32 %v773, %v791
        %v794 = vadd.f32 %v776, %v791
        %v795 = vlaneseq
        %v796 = vshrl.u32 %v795, 7
        %v797 = vsub.s32 2, %v796
        %v798 = vrot.slane %v716, %v797
        %800 = vrot.lane.b32.xlu0 %v798, 64
        %v801 = vpop.permute.xlu0 %800
        %v803 = vadd.f32 %v773, %v801
        %v804 = vadd.f32 %v776, %v801
        %v805 = vpack.c.bf16 %v783, %v783
        %v806 = vpack.c.bf16 %v784, %v784
        %v807 = vpack.c.bf16 %v793, %v793
        %v808 = vpack.c.bf16 %v794, %v794
        %v809 = vpack.c.bf16 %v803, %v803
        %v810 = vpack.c.bf16 %v804, %v804
        %812 = vrot.lane.b32.xlu0 %v807, 96
        %v813 = vpop.permute.xlu0 %812
        %vm814 = vcmask 64512
        %v816 = vsel %vm814, %v805, 0
        %v819 = vsel %vm814, %v813, 0
        %821 = vmatprep.subr.bf16.mxu0 0
        %822 = vmatpush1.bf16.xpose.msra.mxu0 %v819
        %823 = vmatprep.subr.bf16.mxu0 0
        %824 = vmatpush1.bf16.xpose.msra.mxu0 0
        %825 = vmatprep.subr.bf16.mxu0 0
        %826 = vmatpush1.bf16.xpose.msra.mxu0 0
        %827 = vmatprep.subr.bf16.mxu0 0
        %828 = vmatpush1.bf16.xpose.msra.mxu0 0
        %829 = vmatprep.subr.bf16.mxu0 0
        %830 = vmatpush1.bf16.xpose.msra.mxu0 0
        %831 = vmatprep.subr.bf16.mxu0 0
        %832 = vmatpush1.bf16.xpose.msra.mxu0 0
        %833 = vmatprep.subr.bf16.mxu0 0
        %834 = vmatpush1.bf16.xpose.msra.mxu0 0
        %835 = vmatprep.subr.bf16.mxu0 0
        %836 = vmatpush1.bf16.xpose.msra.mxu0 0
        %837 = vmatprep.subr.bf16.mxu0 0
        %838 = vmatpush1.bf16.xpose.msra.mxu0 0
        %839 = vmatprep.subr.bf16.mxu0 0
        %840 = vmatpush1.bf16.xpose.msra.mxu0 0
        %841 = vmatprep.subr.bf16.mxu0 0
        %842 = vmatpush1.bf16.xpose.msra.mxu0 0
        %843 = vmatprep.subr.bf16.mxu0 0
        %844 = vmatpush1.bf16.xpose.msra.mxu0 0
        %845 = vmatprep.subr.bf16.mxu0 0
        %846 = vmatpush1.bf16.xpose.msra.mxu0 0
        %847 = vmatprep.subr.bf16.mxu0 0
        %848 = vmatpush1.bf16.xpose.msra.mxu0 0
        %849 = vmatprep.subr.bf16.mxu0 0
        %850 = vmatpush1.bf16.xpose.msra.mxu0 0
        %851 = vmatprep.subr.bf16.mxu0 0
        %852 = vmatpush1.bf16.xpose.msra.mxu0 0
        %853 = vmatprep.mubr.bf16.mxu0 0
        %854 = vmatmul.mubr.bf16.gmra.mrb[0].mxu0 %v816
        %v855 = vpop.f32.mrb[0].mxu0
        %v856 = vadd.f32 0.0, %v855
        %v857 = vpop.f32.mrb[0].mxu0
        %v858 = vpop.f32.mrb[0].mxu0
        %v859 = vpop.f32.mrb[0].mxu0
        %860 = vdwg.mxu0
        %862 = vrot.lane.b32.xlu0 %v808, 96
        %v863 = vpop.permute.xlu0 %862
        %v865 = vsel %vm814, %v806, 0
        %v868 = vsel %vm814, %v863, 0
        %870 = vmatprep.subr.bf16.mxu0 0
        %871 = vmatpush1.bf16.xpose.msra.mxu0 %v868
        %872 = vmatprep.subr.bf16.mxu0 0
        %873 = vmatpush1.bf16.xpose.msra.mxu0 0
        %874 = vmatprep.subr.bf16.mxu0 0
        %875 = vmatpush1.bf16.xpose.msra.mxu0 0
        %876 = vmatprep.subr.bf16.mxu0 0
        %877 = vmatpush1.bf16.xpose.msra.mxu0 0
        %878 = vmatprep.subr.bf16.mxu0 0
        %879 = vmatpush1.bf16.xpose.msra.mxu0 0
        %880 = vmatprep.subr.bf16.mxu0 0
        %881 = vmatpush1.bf16.xpose.msra.mxu0 0
        %882 = vmatprep.subr.bf16.mxu0 0
        %883 = vmatpush1.bf16.xpose.msra.mxu0 0
        %884 = vmatprep.subr.bf16.mxu0 0
        %885 = vmatpush1.bf16.xpose.msra.mxu0 0
        %886 = vmatprep.subr.bf16.mxu0 0
        %887 = vmatpush1.bf16.xpose.msra.mxu0 0
        %888 = vmatprep.subr.bf16.mxu0 0
        %889 = vmatpush1.bf16.xpose.msra.mxu0 0
        %890 = vmatprep.subr.bf16.mxu0 0
        %891 = vmatpush1.bf16.xpose.msra.mxu0 0
        %892 = vmatprep.subr.bf16.mxu0 0
        %893 = vmatpush1.bf16.xpose.msra.mxu0 0
        %894 = vmatprep.subr.bf16.mxu0 0
        %895 = vmatpush1.bf16.xpose.msra.mxu0 0
        %896 = vmatprep.subr.bf16.mxu0 0
        %897 = vmatpush1.bf16.xpose.msra.mxu0 0
        %898 = vmatprep.subr.bf16.mxu0 0
        %899 = vmatpush1.bf16.xpose.msra.mxu0 0
        %900 = vmatprep.subr.bf16.mxu0 0
        %901 = vmatpush1.bf16.xpose.msra.mxu0 0
        %902 = vmatprep.mubr.bf16.mxu0 0
        %903 = vmatmul.mubr.bf16.gmra.mrb[0].mxu0 %v865
        %v904 = vpop.f32.mrb[0].mxu0
        %v905 = vadd.f32 0.0, %v904
        %v906 = vpop.f32.mrb[0].mxu0
        %v907 = vpop.f32.mrb[0].mxu0
        %v908 = vpop.f32.mrb[0].mxu0
        %909 = vdwg.mxu0
        %v910 = vmul.f32 %v856, 0.35355338
        %v911 = vmul.f32 %v905, 0.35355338
        %v912 = vsel %vm814, %v910, -inf
        %913 = vmax.xlane.f32.xlu0 %v912
        %v914 = vpop.xlane.xlu0 %913
        %v915 = vsel %vm814, %v911, -inf
        %916 = vmax.xlane.f32.xlu0 %v915
        %v917 = vpop.xlane.xlu0 %916
        %v918 = vsub.f32 %v910, %v914
        %v919 = vsub.f32 %v911, %v917
        %v920 = vmul.f32 %v918, 1.442695
        %v921 = vpow.pop %v920
        %v922 = vmul.f32 %v919, 1.442695
        %v923 = vpow.pop %v922
        %v924 = vsel %vm814, %v921, 0.0
        %925 = vadd.xlane.f32.xlu0 %v924
        %v926 = vpop.xlane.xlu0 %925
        %v927 = vsel %vm814, %v923, 0.0
        %928 = vadd.xlane.f32.xlu0 %v927
        %v929 = vpop.xlane.xlu0 %928
        %v930 = vrcp.pop %v926
        %v931 = vrcp.pop %v929
        %v932 = vmul.f32 %v921, %v930
        %v933 = vmul.f32 %v923, %v931
        %v934 = vpack.c.bf16 %v932, %v932
        %v935 = vpack.c.bf16 %v933, %v933
        %937 = vrot.lane.b32.xlu0 %v809, 64
        %v938 = vpop.permute.xlu0 %937
        %v940 = vsel %vm814, %v934, 0
        %vm942 = vcmask 1043456
        %v944 = vsel %vm942, %v938, 0
        %946 = vmatprep.subr.bf16.mxu0 0
        %947 = vmatpush1.bf16.msra.mxu0 %v944
        %948 = vmatprep.subr.bf16.mxu0 0
        %949 = vmatpush1.bf16.msra.mxu0 0
        %950 = vmatprep.subr.bf16.mxu0 0
        %951 = vmatpush1.bf16.msra.mxu0 0
        %952 = vmatprep.subr.bf16.mxu0 0
        %953 = vmatpush1.bf16.msra.mxu0 0
        %954 = vmatprep.subr.bf16.mxu0 0
        %955 = vmatpush1.bf16.msra.mxu0 0
        %956 = vmatprep.subr.bf16.mxu0 0
        %957 = vmatpush1.bf16.msra.mxu0 0
        %958 = vmatprep.subr.bf16.mxu0 0
        %959 = vmatpush1.bf16.msra.mxu0 0
        %960 = vmatprep.subr.bf16.mxu0 0
        %961 = vmatpush1.bf16.msra.mxu0 0
        %962 = vmatprep.subr.bf16.mxu0 0
        %963 = vmatpush1.bf16.msra.mxu0 0
        %964 = vmatprep.subr.bf16.mxu0 0
        %965 = vmatpush1.bf16.msra.mxu0 0
        %966 = vmatprep.subr.bf16.mxu0 0
        %967 = vmatpush1.bf16.msra.mxu0 0
        %968 = vmatprep.subr.bf16.mxu0 0
        %969 = vmatpush1.bf16.msra.mxu0 0
        %970 = vmatprep.subr.bf16.mxu0 0
        %971 = vmatpush1.bf16.msra.mxu0 0
        %972 = vmatprep.subr.bf16.mxu0 0
        %973 = vmatpush1.bf16.msra.mxu0 0
        %974 = vmatprep.subr.bf16.mxu0 0
        %975 = vmatpush1.bf16.msra.mxu0 0
        %976 = vmatprep.subr.bf16.mxu0 0
        %977 = vmatpush1.bf16.msra.mxu0 0
        %978 = vmatprep.mubr.bf16.mxu0 0
        %979 = vmatmul.mubr.bf16.gmra.mrb[0].mxu0 %v940
        %v980 = vpop.f32.mrb[0].mxu0
        %v981 = vadd.f32 0.0, %v980
        %v982 = vpop.f32.mrb[0].mxu0
        %v983 = vpop.f32.mrb[0].mxu0
        %v984 = vpop.f32.mrb[0].mxu0
        %985 = vdwg.mxu0
        %987 = vrot.lane.b32.xlu0 %v810, 64
        %v988 = vpop.permute.xlu0 %987
        %v990 = vsel %vm814, %v935, 0
        %v993 = vsel %vm942, %v988, 0
        %995 = vmatprep.subr.bf16.mxu0 0
        %996 = vmatpush1.bf16.msra.mxu0 %v993
        %997 = vmatprep.subr.bf16.mxu0 0
        %998 = vmatpush1.bf16.msra.mxu0 0
        %999 = vmatprep.subr.bf16.mxu0 0
        %1000 = vmatpush1.bf16.msra.mxu0 0
        %1001 = vmatprep.subr.bf16.mxu0 0
        %1002 = vmatpush1.bf16.msra.mxu0 0
        %1003 = vmatprep.subr.bf16.mxu0 0
        %1004 = vmatpush1.bf16.msra.mxu0 0
        %1005 = vmatprep.subr.bf16.mxu0 0
        %1006 = vmatpush1.bf16.msra.mxu0 0
        %1007 = vmatprep.subr.bf16.mxu0 0
        %1008 = vmatpush1.bf16.msra.mxu0 0
        %1009 = vmatprep.subr.bf16.mxu0 0
        %1010 = vmatpush1.bf16.msra.mxu0 0
        %1011 = vmatprep.subr.bf16.mxu0 0
        %1012 = vmatpush1.bf16.msra.mxu0 0
        %1013 = vmatprep.subr.bf16.mxu0 0
        %1014 = vmatpush1.bf16.msra.mxu0 0
        %1015 = vmatprep.subr.bf16.mxu0 0
        %1016 = vmatpush1.bf16.msra.mxu0 0
        %1017 = vmatprep.subr.bf16.mxu0 0
        %1018 = vmatpush1.bf16.msra.mxu0 0
        %1019 = vmatprep.subr.bf16.mxu0 0
        %1020 = vmatpush1.bf16.msra.mxu0 0
        %1021 = vmatprep.subr.bf16.mxu0 0
        %1022 = vmatpush1.bf16.msra.mxu0 0
        %1023 = vmatprep.subr.bf16.mxu0 0
        %1024 = vmatpush1.bf16.msra.mxu0 0
        %1025 = vmatprep.subr.bf16.mxu0 0
        %1026 = vmatpush1.bf16.msra.mxu0 0
        %1027 = vmatprep.mubr.bf16.mxu0 0
        %1028 = vmatmul.mubr.bf16.gmra.mrb[0].mxu0 %v990
        %v1029 = vpop.f32.mrb[0].mxu0
        %v1030 = vadd.f32 0.0, %v1029
        %v1031 = vpop.f32.mrb[0].mxu0
        %v1032 = vpop.f32.mrb[0].mxu0
        %v1033 = vpop.f32.mrb[0].mxu0
        %1034 = vdwg.mxu0
        %1036 = vrot.lane.b32.xlu0 %v805, 120
        %v1037 = vpop.permute.xlu0 %1036
        %1038 = vrot.lane.b32.xlu0 %v807, 88
        %v1039 = vpop.permute.xlu0 %1038
        %v1041 = vsel %vm814, %v1037, 0
        %v1044 = vsel %vm814, %v1039, 0
        %1046 = vmatprep.subr.bf16.mxu0 0
        %1047 = vmatpush1.bf16.xpose.msra.mxu0 %v1044
        %1048 = vmatprep.subr.bf16.mxu0 0
        %1049 = vmatpush1.bf16.xpose.msra.mxu0 0
        %1050 = vmatprep.subr.bf16.mxu0 0
        %1051 = vmatpush1.bf16.xpose.msra.mxu0 0
        %1052 = vmatprep.subr.bf16.mxu0 0
        %1053 = vmatpush1.bf16.xpose.msra.mxu0 0
        %1054 = vmatprep.subr.bf16.mxu0 0
        %1055 = vmatpush1.bf16.xpose.msra.mxu0 0
        %1056 = vmatprep.subr.bf16.mxu0 0
        %1057 = vmatpush1.bf16.xpose.msra.mxu0 0
        %1058 = vmatprep.subr.bf16.mxu0 0
        %1059 = vmatpush1.bf16.xpose.msra.mxu0 0
        %1060 = vmatprep.subr.bf16.mxu0 0
        %1061 = vmatpush1.bf16.xpose.msra.mxu0 0
        %1062 = vmatprep.subr.bf16.mxu0 0
        %1063 = vmatpush1.bf16.xpose.msra.mxu0 0
        %1064 = vmatprep.subr.bf16.mxu0 0
        %1065 = vmatpush1.bf16.xpose.msra.mxu0 0
        %1066 = vmatprep.subr.bf16.mxu0 0
        %1067 = vmatpush1.bf16.xpose.msra.mxu0 0
        %1068 = vmatprep.subr.bf16.mxu0 0
        %1069 = vmatpush1.bf16.xpose.msra.mxu0 0
        %1070 = vmatprep.subr.bf16.mxu0 0
        %1071 = vmatpush1.bf16.xpose.msra.mxu0 0
        %1072 = vmatprep.subr.bf16.mxu0 0
        %1073 = vmatpush1.bf16.xpose.msra.mxu0 0
        %1074 = vmatprep.subr.bf16.mxu0 0
        %1075 = vmatpush1.bf16.xpose.msra.mxu0 0
        %1076 = vmatprep.subr.bf16.mxu0 0
        %1077 = vmatpush1.bf16.xpose.msra.mxu0 0
        %1078 = vmatprep.mubr.bf16.mxu0 0
        %1079 = vmatmul.mubr.bf16.gmra.mrb[0].mxu0 %v1041
        %v1080 = vpop.f32.mrb[0].mxu0
        %v1081 = vadd.f32 0.0, %v1080
        %v1082 = vpop.f32.mrb[0].mxu0
        %v1083 = vpop.f32.mrb[0].mxu0
        %v1084 = vpop.f32.mrb[0].mxu0
        %1085 = vdwg.mxu0
        %1087 = vrot.lane.b32.xlu0 %v806, 120
        %v1088 = vpop.permute.xlu0 %1087
        %1089 = vrot.lane.b32.xlu0 %v808, 88
        %v1090 = vpop.permute.xlu0 %1089
        %v1092 = vsel %vm814, %v1088, 0
        %v1095 = vsel %vm814, %v1090, 0
        %1097 = vmatprep.subr.bf16.mxu0 0
        %1098 = vmatpush1.bf16.xpose.msra.mxu0 %v1095
        %1099 = vmatprep.subr.bf16.mxu0 0
        %1100 = vmatpush1.bf16.xpose.msra.mxu0 0
        %1101 = vmatprep.subr.bf16.mxu0 0
        %1102 = vmatpush1.bf16.xpose.msra.mxu0 0
        %1103 = vmatprep.subr.bf16.mxu0 0
        %1104 = vmatpush1.bf16.xpose.msra.mxu0 0
        %1105 = vmatprep.subr.bf16.mxu0 0
        %1106 = vmatpush1.bf16.xpose.msra.mxu0 0
        %1107 = vmatprep.subr.bf16.mxu0 0
        %1108 = vmatpush1.bf16.xpose.msra.mxu0 0
        %1109 = vmatprep.subr.bf16.mxu0 0
        %1110 = vmatpush1.bf16.xpose.msra.mxu0 0
        %1111 = vmatprep.subr.bf16.mxu0 0
        %1112 = vmatpush1.bf16.xpose.msra.mxu0 0
        %1113 = vmatprep.subr.bf16.mxu0 0
        %1114 = vmatpush1.bf16.xpose.msra.mxu0 0
        %1115 = vmatprep.subr.bf16.mxu0 0
        %1116 = vmatpush1.bf16.xpose.msra.mxu0 0
        %1117 = vmatprep.subr.bf16.mxu0 0
        %1118 = vmatpush1.bf16.xpose.msra.mxu0 0
        %1119 = vmatprep.subr.bf16.mxu0 0
        %1120 = vmatpush1.bf16.xpose.msra.mxu0 0
        %1121 = vmatprep.subr.bf16.mxu0 0
        %1122 = vmatpush1.bf16.xpose.msra.mxu0 0
        %1123 = vmatprep.subr.bf16.mxu0 0
        %1124 = vmatpush1.bf16.xpose.msra.mxu0 0
        %1125 = vmatprep.subr.bf16.mxu0 0
        %1126 = vmatpush1.bf16.xpose.msra.mxu0 0
        %1127 = vmatprep.subr.bf16.mxu0 0
        %1128 = vmatpush1.bf16.xpose.msra.mxu0 0
        %1129 = vmatprep.mubr.bf16.mxu0 0
        %1130 = vmatmul.mubr.bf16.gmra.mrb[0].mxu0 %v1092
        %v1131 = vpop.f32.mrb[0].mxu0
        %v1132 = vadd.f32 0.0, %v1131
        %v1133 = vpop.f32.mrb[0].mxu0
        %v1134 = vpop.f32.mrb[0].mxu0
        %v1135 = vpop.f32.mrb[0].mxu0
        %1136 = vdwg.mxu0
        %v1137 = vmul.f32 %v1081, 0.35355338
        %v1138 = vmul.f32 %v1132, 0.35355338
        %v1139 = vsel %vm814, %v1137, -inf
        %1140 = vmax.xlane.f32.xlu0 %v1139
        %v1141 = vpop.xlane.xlu0 %1140
        %v1142 = vsel %vm814, %v1138, -inf
        %1143 = vmax.xlane.f32.xlu0 %v1142
        %v1144 = vpop.xlane.xlu0 %1143
        %v1145 = vsub.f32 %v1137, %v1141
        %v1146 = vsub.f32 %v1138, %v1144
        %v1147 = vmul.f32 %v1145, 1.442695
        %v1148 = vpow.pop %v1147
        %v1149 = vmul.f32 %v1146, 1.442695
        %v1150 = vpow.pop %v1149
        %v1151 = vsel %vm814, %v1148, 0.0
        %1152 = vadd.xlane.f32.xlu0 %v1151
        %v1153 = vpop.xlane.xlu0 %1152
        %v1154 = vsel %vm814, %v1150, 0.0
        %1155 = vadd.xlane.f32.xlu0 %v1154
        %v1156 = vpop.xlane.xlu0 %1155
        %v1157 = vrcp.pop %v1153
        %v1158 = vrcp.pop %v1156
        %v1159 = vmul.f32 %v1148, %v1157
        %v1160 = vmul.f32 %v1150, %v1158
        %v1161 = vpack.c.bf16 %v1159, %v1159
        %v1162 = vpack.c.bf16 %v1160, %v1160
        %1163 = vrot.lane.b32.xlu0 %v809, 56
        %v1164 = vpop.permute.xlu0 %1163
        %v1166 = vsel %vm814, %v1161, 0
        %v1169 = vsel %vm942, %v1164, 0
        %1171 = vmatprep.subr.bf16.mxu0 0
        %1172 = vmatpush1.bf16.msra.mxu0 %v1169
        %1173 = vmatprep.subr.bf16.mxu0 0
        %1174 = vmatpush1.bf16.msra.mxu0 0
        %1175 = vmatprep.subr.bf16.mxu0 0
        %1176 = vmatpush1.bf16.msra.mxu0 0
        %1177 = vmatprep.subr.bf16.mxu0 0
        %1178 = vmatpush1.bf16.msra.mxu0 0
        %1179 = vmatprep.subr.bf16.mxu0 0
        %1180 = vmatpush1.bf16.msra.mxu0 0
        %1181 = vmatprep.subr.bf16.mxu0 0
        %1182 = vmatpush1.bf16.msra.mxu0 0
        %1183 = vmatprep.subr.bf16.mxu0 0
        %1184 = vmatpush1.bf16.msra.mxu0 0
        %1185 = vmatprep.subr.bf16.mxu0 0
        %1186 = vmatpush1.bf16.msra.mxu0 0
        %1187 = vmatprep.subr.bf16.mxu0 0
        %1188 = vmatpush1.bf16.msra.mxu0 0
        %1189 = vmatprep.subr.bf16.mxu0 0
        %1190 = vmatpush1.bf16.msra.mxu0 0
        %1191 = vmatprep.subr.bf16.mxu0 0
        %1192 = vmatpush1.bf16.msra.mxu0 0
        %1193 = vmatprep.subr.bf16.mxu0 0
        %1194 = vmatpush1.bf16.msra.mxu0 0
        %1195 = vmatprep.subr.bf16.mxu0 0
        %1196 = vmatpush1.bf16.msra.mxu0 0
        %1197 = vmatprep.subr.bf16.mxu0 0
        %1198 = vmatpush1.bf16.msra.mxu0 0
        %1199 = vmatprep.subr.bf16.mxu0 0
        %1200 = vmatpush1.bf16.msra.mxu0 0
        %1201 = vmatprep.subr.bf16.mxu0 0
        %1202 = vmatpush1.bf16.msra.mxu0 0
        %1203 = vmatprep.mubr.bf16.mxu0 0
        %1204 = vmatmul.mubr.bf16.gmra.mrb[0].mxu0 %v1166
        %v1205 = vpop.f32.mrb[0].mxu0
        %v1206 = vadd.f32 0.0, %v1205
        %v1207 = vpop.f32.mrb[0].mxu0
        %v1208 = vpop.f32.mrb[0].mxu0
        %v1209 = vpop.f32.mrb[0].mxu0
        %1210 = vdwg.mxu0
        %1211 = vrot.lane.b32.xlu0 %v810, 56
        %v1212 = vpop.permute.xlu0 %1211
        %v1214 = vsel %vm814, %v1162, 0
        %v1217 = vsel %vm942, %v1212, 0
        %1219 = vmatprep.subr.bf16.mxu0 0
        %1220 = vmatpush1.bf16.msra.mxu0 %v1217
        %1221 = vmatprep.subr.bf16.mxu0 0
        %1222 = vmatpush1.bf16.msra.mxu0 0
        %1223 = vmatprep.subr.bf16.mxu0 0
        %1224 = vmatpush1.bf16.msra.mxu0 0
        %1225 = vmatprep.subr.bf16.mxu0 0
        %1226 = vmatpush1.bf16.msra.mxu0 0
        %1227 = vmatprep.subr.bf16.mxu0 0
        %1228 = vmatpush1.bf16.msra.mxu0 0
        %1229 = vmatprep.subr.bf16.mxu0 0
        %1230 = vmatpush1.bf16.msra.mxu0 0
        %1231 = vmatprep.subr.bf16.mxu0 0
        %1232 = vmatpush1.bf16.msra.mxu0 0
        %1233 = vmatprep.subr.bf16.mxu0 0
        %1234 = vmatpush1.bf16.msra.mxu0 0
        %1235 = vmatprep.subr.bf16.mxu0 0
        %1236 = vmatpush1.bf16.msra.mxu0 0
        %1237 = vmatprep.subr.bf16.mxu0 0
        %1238 = vmatpush1.bf16.msra.mxu0 0
        %1239 = vmatprep.subr.bf16.mxu0 0
        %1240 = vmatpush1.bf16.msra.mxu0 0
        %1241 = vmatprep.subr.bf16.mxu0 0
        %1242 = vmatpush1.bf16.msra.mxu0 0
        %1243 = vmatprep.subr.bf16.mxu0 0
        %1244 = vmatpush1.bf16.msra.mxu0 0
        %1245 = vmatprep.subr.bf16.mxu0 0
        %1246 = vmatpush1.bf16.msra.mxu0 0
        %1247 = vmatprep.subr.bf16.mxu0 0
        %1248 = vmatpush1.bf16.msra.mxu0 0
        %1249 = vmatprep.subr.bf16.mxu0 0
        %1250 = vmatpush1.bf16.msra.mxu0 0
        %1251 = vmatprep.mubr.bf16.mxu0 0
        %1252 = vmatmul.mubr.bf16.gmra.mrb[0].mxu0 %v1214
        %v1253 = vpop.f32.mrb[0].mxu0
        %v1254 = vadd.f32 0.0, %v1253
        %v1255 = vpop.f32.mrb[0].mxu0
        %v1256 = vpop.f32.mrb[0].mxu0
        %v1257 = vpop.f32.mrb[0].mxu0
        %1258 = vdwg.mxu0
        %1259 = vrot.lane.b32.xlu0 %v805, 112
        %v1260 = vpop.permute.xlu0 %1259
        %1261 = vrot.lane.b32.xlu0 %v807, 80
        %v1262 = vpop.permute.xlu0 %1261
        %v1264 = vsel %vm814, %v1260, 0
        %v1267 = vsel %vm814, %v1262, 0
        %1269 = vmatprep.subr.bf16.mxu0 0
        %1270 = vmatpush1.bf16.xpose.msra.mxu0 %v1267
        %1271 = vmatprep.subr.bf16.mxu0 0
        %1272 = vmatpush1.bf16.xpose.msra.mxu0 0
        %1273 = vmatprep.subr.bf16.mxu0 0
        %1274 = vmatpush1.bf16.xpose.msra.mxu0 0
        %1275 = vmatprep.subr.bf16.mxu0 0
        %1276 = vmatpush1.bf16.xpose.msra.mxu0 0
        %1277 = vmatprep.subr.bf16.mxu0 0
        %1278 = vmatpush1.bf16.xpose.msra.mxu0 0
        %1279 = vmatprep.subr.bf16.mxu0 0
        %1280 = vmatpush1.bf16.xpose.msra.mxu0 0
        %1281 = vmatprep.subr.bf16.mxu0 0
        %1282 = vmatpush1.bf16.xpose.msra.mxu0 0
        %1283 = vmatprep.subr.bf16.mxu0 0
        %1284 = vmatpush1.bf16.xpose.msra.mxu0 0
        %1285 = vmatprep.subr.bf16.mxu0 0
        %1286 = vmatpush1.bf16.xpose.msra.mxu0 0
        %1287 = vmatprep.subr.bf16.mxu0 0
        %1288 = vmatpush1.bf16.xpose.msra.mxu0 0
        %1289 = vmatprep.subr.bf16.mxu0 0
        %1290 = vmatpush1.bf16.xpose.msra.mxu0 0
        %1291 = vmatprep.subr.bf16.mxu0 0
        %1292 = vmatpush1.bf16.xpose.msra.mxu0 0
        %1293 = vmatprep.subr.bf16.mxu0 0
        %1294 = vmatpush1.bf16.xpose.msra.mxu0 0
        %1295 = vmatprep.subr.bf16.mxu0 0
        %1296 = vmatpush1.bf16.xpose.msra.mxu0 0
        %1297 = vmatprep.subr.bf16.mxu0 0
        %1298 = vmatpush1.bf16.xpose.msra.mxu0 0
        %1299 = vmatprep.subr.bf16.mxu0 0
        %1300 = vmatpush1.bf16.xpose.msra.mxu0 0
        %1301 = vmatprep.mubr.bf16.mxu0 0
        %1302 = vmatmul.mubr.bf16.gmra.mrb[0].mxu0 %v1264
        %v1303 = vpop.f32.mrb[0].mxu0
        %v1304 = vadd.f32 0.0, %v1303
        %v1305 = vpop.f32.mrb[0].mxu0
        %v1306 = vpop.f32.mrb[0].mxu0
        %v1307 = vpop.f32.mrb[0].mxu0
        %1308 = vdwg.mxu0
        %1309 = vrot.lane.b32.xlu0 %v806, 112
        %v1310 = vpop.permute.xlu0 %1309
        %1311 = vrot.lane.b32.xlu0 %v808, 80
        %v1312 = vpop.permute.xlu0 %1311
        %v1314 = vsel %vm814, %v1310, 0
        %v1317 = vsel %vm814, %v1312, 0
        %1319 = vmatprep.subr.bf16.mxu0 0
        %1320 = vmatpush1.bf16.xpose.msra.mxu0 %v1317
        %1321 = vmatprep.subr.bf16.mxu0 0
        %1322 = vmatpush1.bf16.xpose.msra.mxu0 0
        %1323 = vmatprep.subr.bf16.mxu0 0
        %1324 = vmatpush1.bf16.xpose.msra.mxu0 0
        %1325 = vmatprep.subr.bf16.mxu0 0
        %1326 = vmatpush1.bf16.xpose.msra.mxu0 0
        %1327 = vmatprep.subr.bf16.mxu0 0
        %1328 = vmatpush1.bf16.xpose.msra.mxu0 0
        %1329 = vmatprep.subr.bf16.mxu0 0
        %1330 = vmatpush1.bf16.xpose.msra.mxu0 0
        %1331 = vmatprep.subr.bf16.mxu0 0
        %1332 = vmatpush1.bf16.xpose.msra.mxu0 0
        %1333 = vmatprep.subr.bf16.mxu0 0
        %1334 = vmatpush1.bf16.xpose.msra.mxu0 0
        %1335 = vmatprep.subr.bf16.mxu0 0
        %1336 = vmatpush1.bf16.xpose.msra.mxu0 0
        %1337 = vmatprep.subr.bf16.mxu0 0
        %1338 = vmatpush1.bf16.xpose.msra.mxu0 0
        %1339 = vmatprep.subr.bf16.mxu0 0
        %1340 = vmatpush1.bf16.xpose.msra.mxu0 0
        %1341 = vmatprep.subr.bf16.mxu0 0
        %1342 = vmatpush1.bf16.xpose.msra.mxu0 0
        %1343 = vmatprep.subr.bf16.mxu0 0
        %1344 = vmatpush1.bf16.xpose.msra.mxu0 0
        %1345 = vmatprep.subr.bf16.mxu0 0
        %1346 = vmatpush1.bf16.xpose.msra.mxu0 0
        %1347 = vmatprep.subr.bf16.mxu0 0
        %1348 = vmatpush1.bf16.xpose.msra.mxu0 0
        %1349 = vmatprep.subr.bf16.mxu0 0
        %1350 = vmatpush1.bf16.xpose.msra.mxu0 0
        %1351 = vmatprep.mubr.bf16.mxu0 0
        %1352 = vmatmul.mubr.bf16.gmra.mrb[0].mxu0 %v1314
        %v1353 = vpop.f32.mrb[0].mxu0
        %v1354 = vadd.f32 0.0, %v1353
        %v1355 = vpop.f32.mrb[0].mxu0
        %v1356 = vpop.f32.mrb[0].mxu0
        %v1357 = vpop.f32.mrb[0].mxu0
        %1358 = vdwg.mxu0
        %v1359 = vmul.f32 %v1304, 0.35355338
        %v1360 = vmul.f32 %v1354, 0.35355338
        %v1361 = vsel %vm814, %v1359, -inf
        %1362 = vmax.xlane.f32.xlu0 %v1361
        %v1363 = vpop.xlane.xlu0 %1362
        %v1364 = vsel %vm814, %v1360, -inf
        %1365 = vmax.xlane.f32.xlu0 %v1364
        %v1366 = vpop.xlane.xlu0 %1365
        %v1367 = vsub.f32 %v1359, %v1363
        %v1368 = vsub.f32 %v1360, %v1366
        %v1369 = vmul.f32 %v1367, 1.442695
        %v1370 = vpow.pop %v1369
        %v1371 = vmul.f32 %v1368, 1.442695
        %v1372 = vpow.pop %v1371
        %v1373 = vsel %vm814, %v1370, 0.0
        %1374 = vadd.xlane.f32.xlu0 %v1373
        %v1375 = vpop.xlane.xlu0 %1374
        %v1376 = vsel %vm814, %v1372, 0.0
        %1377 = vadd.xlane.f32.xlu0 %v1376
        %v1378 = vpop.xlane.xlu0 %1377
        %v1379 = vrcp.pop %v1375
        %v1380 = vrcp.pop %v1378
        %v1381 = vmul.f32 %v1370, %v1379
        %v1382 = vmul.f32 %v1372, %v1380
        %v1383 = vpack.c.bf16 %v1381, %v1381
        %v1384 = vpack.c.bf16 %v1382, %v1382
        %1385 = vrot.lane.b32.xlu0 %v809, 48
        %v1386 = vpop.permute.xlu0 %1385
        %v1388 = vsel %vm814, %v1383, 0
        %v1391 = vsel %vm942, %v1386, 0
        %1393 = vmatprep.subr.bf16.mxu0 0
        %1394 = vmatpush1.bf16.msra.mxu0 %v1391
        %1395 = vmatprep.subr.bf16.mxu0 0
        %1396 = vmatpush1.bf16.msra.mxu0 0
        %1397 = vmatprep.subr.bf16.mxu0 0
        %1398 = vmatpush1.bf16.msra.mxu0 0
        %1399 = vmatprep.subr.bf16.mxu0 0
        %1400 = vmatpush1.bf16.msra.mxu0 0
        %1401 = vmatprep.subr.bf16.mxu0 0
        %1402 = vmatpush1.bf16.msra.mxu0 0
        %1403 = vmatprep.subr.bf16.mxu0 0
        %1404 = vmatpush1.bf16.msra.mxu0 0
        %1405 = vmatprep.subr.bf16.mxu0 0
        %1406 = vmatpush1.bf16.msra.mxu0 0
        %1407 = vmatprep.subr.bf16.mxu0 0
        %1408 = vmatpush1.bf16.msra.mxu0 0
        %1409 = vmatprep.subr.bf16.mxu0 0
        %1410 = vmatpush1.bf16.msra.mxu0 0
        %1411 = vmatprep.subr.bf16.mxu0 0
        %1412 = vmatpush1.bf16.msra.mxu0 0
        %1413 = vmatprep.subr.bf16.mxu0 0
        %1414 = vmatpush1.bf16.msra.mxu0 0
        %1415 = vmatprep.subr.bf16.mxu0 0
        %1416 = vmatpush1.bf16.msra.mxu0 0
        %1417 = vmatprep.subr.bf16.mxu0 0
        %1418 = vmatpush1.bf16.msra.mxu0 0
        %1419 = vmatprep.subr.bf16.mxu0 0
        %1420 = vmatpush1.bf16.msra.mxu0 0
        %1421 = vmatprep.subr.bf16.mxu0 0
        %1422 = vmatpush1.bf16.msra.mxu0 0
        %1423 = vmatprep.subr.bf16.mxu0 0
        %1424 = vmatpush1.bf16.msra.mxu0 0
        %1425 = vmatprep.mubr.bf16.mxu0 0
        %1426 = vmatmul.mubr.bf16.gmra.mrb[0].mxu0 %v1388
        %v1427 = vpop.f32.mrb[0].mxu0
        %v1428 = vadd.f32 0.0, %v1427
        %v1429 = vpop.f32.mrb[0].mxu0
        %v1430 = vpop.f32.mrb[0].mxu0
        %v1431 = vpop.f32.mrb[0].mxu0
        %1432 = vdwg.mxu0
        %1433 = vrot.lane.b32.xlu0 %v810, 48
        %v1434 = vpop.permute.xlu0 %1433
        %v1436 = vsel %vm814, %v1384, 0
        %v1439 = vsel %vm942, %v1434, 0
        %1441 = vmatprep.subr.bf16.mxu0 0
        %1442 = vmatpush1.bf16.msra.mxu0 %v1439
        %1443 = vmatprep.subr.bf16.mxu0 0
        %1444 = vmatpush1.bf16.msra.mxu0 0
        %1445 = vmatprep.subr.bf16.mxu0 0
        %1446 = vmatpush1.bf16.msra.mxu0 0
        %1447 = vmatprep.subr.bf16.mxu0 0
        %1448 = vmatpush1.bf16.msra.mxu0 0
        %1449 = vmatprep.subr.bf16.mxu0 0
        %1450 = vmatpush1.bf16.msra.mxu0 0
        %1451 = vmatprep.subr.bf16.mxu0 0
        %1452 = vmatpush1.bf16.msra.mxu0 0
        %1453 = vmatprep.subr.bf16.mxu0 0
        %1454 = vmatpush1.bf16.msra.mxu0 0
        %1455 = vmatprep.subr.bf16.mxu0 0
        %1456 = vmatpush1.bf16.msra.mxu0 0
        %1457 = vmatprep.subr.bf16.mxu0 0
        %1458 = vmatpush1.bf16.msra.mxu0 0
        %1459 = vmatprep.subr.bf16.mxu0 0
        %1460 = vmatpush1.bf16.msra.mxu0 0
        %1461 = vmatprep.subr.bf16.mxu0 0
        %1462 = vmatpush1.bf16.msra.mxu0 0
        %1463 = vmatprep.subr.bf16.mxu0 0
        %1464 = vmatpush1.bf16.msra.mxu0 0
        %1465 = vmatprep.subr.bf16.mxu0 0
        %1466 = vmatpush1.bf16.msra.mxu0 0
        %1467 = vmatprep.subr.bf16.mxu0 0
        %1468 = vmatpush1.bf16.msra.mxu0 0
        %1469 = vmatprep.subr.bf16.mxu0 0
        %1470 = vmatpush1.bf16.msra.mxu0 0
        %1471 = vmatprep.subr.bf16.mxu0 0
        %1472 = vmatpush1.bf16.msra.mxu0 0
        %1473 = vmatprep.mubr.bf16.mxu0 0
        %1474 = vmatmul.mubr.bf16.gmra.mrb[0].mxu0 %v1436
        %v1475 = vpop.f32.mrb[0].mxu0
        %v1476 = vadd.f32 0.0, %v1475
        %v1477 = vpop.f32.mrb[0].mxu0
        %v1478 = vpop.f32.mrb[0].mxu0
        %v1479 = vpop.f32.mrb[0].mxu0
        %1480 = vdwg.mxu0
        %1481 = vrot.lane.b32.xlu0 %v805, 104
        %v1482 = vpop.permute.xlu0 %1481
        %1483 = vrot.lane.b32.xlu0 %v807, 72
        %v1484 = vpop.permute.xlu0 %1483
        %v1486 = vsel %vm814, %v1482, 0
        %v1489 = vsel %vm814, %v1484, 0
        %1491 = vmatprep.subr.bf16.mxu0 0
        %1492 = vmatpush1.bf16.xpose.msra.mxu0 %v1489
        %1493 = vmatprep.subr.bf16.mxu0 0
        %1494 = vmatpush1.bf16.xpose.msra.mxu0 0
        %1495 = vmatprep.subr.bf16.mxu0 0
        %1496 = vmatpush1.bf16.xpose.msra.mxu0 0
        %1497 = vmatprep.subr.bf16.mxu0 0
        %1498 = vmatpush1.bf16.xpose.msra.mxu0 0
        %1499 = vmatprep.subr.bf16.mxu0 0
        %1500 = vmatpush1.bf16.xpose.msra.mxu0 0
        %1501 = vmatprep.subr.bf16.mxu0 0
        %1502 = vmatpush1.bf16.xpose.msra.mxu0 0
        %1503 = vmatprep.subr.bf16.mxu0 0
        %1504 = vmatpush1.bf16.xpose.msra.mxu0 0
        %1505 = vmatprep.subr.bf16.mxu0 0
        %1506 = vmatpush1.bf16.xpose.msra.mxu0 0
        %1507 = vmatprep.subr.bf16.mxu0 0
        %1508 = vmatpush1.bf16.xpose.msra.mxu0 0
        %1509 = vmatprep.subr.bf16.mxu0 0
        %1510 = vmatpush1.bf16.xpose.msra.mxu0 0
        %1511 = vmatprep.subr.bf16.mxu0 0
        %1512 = vmatpush1.bf16.xpose.msra.mxu0 0
        %1513 = vmatprep.subr.bf16.mxu0 0
        %1514 = vmatpush1.bf16.xpose.msra.mxu0 0
        %1515 = vmatprep.subr.bf16.mxu0 0
        %1516 = vmatpush1.bf16.xpose.msra.mxu0 0
        %1517 = vmatprep.subr.bf16.mxu0 0
        %1518 = vmatpush1.bf16.xpose.msra.mxu0 0
        %1519 = vmatprep.subr.bf16.mxu0 0
        %1520 = vmatpush1.bf16.xpose.msra.mxu0 0
        %1521 = vmatprep.subr.bf16.mxu0 0
        %1522 = vmatpush1.bf16.xpose.msra.mxu0 0
        %1523 = vmatprep.mubr.bf16.mxu0 0
        %1524 = vmatmul.mubr.bf16.gmra.mrb[0].mxu0 %v1486
        %v1525 = vpop.f32.mrb[0].mxu0
        %v1526 = vadd.f32 0.0, %v1525
        %v1527 = vpop.f32.mrb[0].mxu0
        %v1528 = vpop.f32.mrb[0].mxu0
        %v1529 = vpop.f32.mrb[0].mxu0
        %1530 = vdwg.mxu0
        %1531 = vrot.lane.b32.xlu0 %v806, 104
        %v1532 = vpop.permute.xlu0 %1531
        %1533 = vrot.lane.b32.xlu0 %v808, 72
        %v1534 = vpop.permute.xlu0 %1533
        %v1536 = vsel %vm814, %v1532, 0
        %v1539 = vsel %vm814, %v1534, 0
        %1541 = vmatprep.subr.bf16.mxu0 0
        %1542 = vmatpush1.bf16.xpose.msra.mxu0 %v1539
        %1543 = vmatprep.subr.bf16.mxu0 0
        %1544 = vmatpush1.bf16.xpose.msra.mxu0 0
        %1545 = vmatprep.subr.bf16.mxu0 0
        %1546 = vmatpush1.bf16.xpose.msra.mxu0 0
        %1547 = vmatprep.subr.bf16.mxu0 0
        %1548 = vmatpush1.bf16.xpose.msra.mxu0 0
        %1549 = vmatprep.subr.bf16.mxu0 0
        %1550 = vmatpush1.bf16.xpose.msra.mxu0 0
        %1551 = vmatprep.subr.bf16.mxu0 0
        %1552 = vmatpush1.bf16.xpose.msra.mxu0 0
        %1553 = vmatprep.subr.bf16.mxu0 0
        %1554 = vmatpush1.bf16.xpose.msra.mxu0 0
        %1555 = vmatprep.subr.bf16.mxu0 0
        %1556 = vmatpush1.bf16.xpose.msra.mxu0 0
        %1557 = vmatprep.subr.bf16.mxu0 0
        %1558 = vmatpush1.bf16.xpose.msra.mxu0 0
        %1559 = vmatprep.subr.bf16.mxu0 0
        %1560 = vmatpush1.bf16.xpose.msra.mxu0 0
        %1561 = vmatprep.subr.bf16.mxu0 0
        %1562 = vmatpush1.bf16.xpose.msra.mxu0 0
        %1563 = vmatprep.subr.bf16.mxu0 0
        %1564 = vmatpush1.bf16.xpose.msra.mxu0 0
        %1565 = vmatprep.subr.bf16.mxu0 0
        %1566 = vmatpush1.bf16.xpose.msra.mxu0 0
        %1567 = vmatprep.subr.bf16.mxu0 0
        %1568 = vmatpush1.bf16.xpose.msra.mxu0 0
        %1569 = vmatprep.subr.bf16.mxu0 0
        %1570 = vmatpush1.bf16.xpose.msra.mxu0 0
        %1571 = vmatprep.subr.bf16.mxu0 0
        %1572 = vmatpush1.bf16.xpose.msra.mxu0 0
        %1573 = vmatprep.mubr.bf16.mxu0 0
        %1574 = vmatmul.mubr.bf16.gmra.mrb[0].mxu0 %v1536
        %v1575 = vpop.f32.mrb[0].mxu0
        %v1576 = vadd.f32 0.0, %v1575
        %v1577 = vpop.f32.mrb[0].mxu0
        %v1578 = vpop.f32.mrb[0].mxu0
        %v1579 = vpop.f32.mrb[0].mxu0
        %1580 = vdwg.mxu0
        %v1581 = vmul.f32 %v1526, 0.35355338
        %v1582 = vmul.f32 %v1576, 0.35355338
        %v1583 = vsel %vm814, %v1581, -inf
        %1584 = vmax.xlane.f32.xlu0 %v1583
        %v1585 = vpop.xlane.xlu0 %1584
        %v1586 = vsel %vm814, %v1582, -inf
        %1587 = vmax.xlane.f32.xlu0 %v1586
        %v1588 = vpop.xlane.xlu0 %1587
        %v1589 = vsub.f32 %v1581, %v1585
        %v1590 = vsub.f32 %v1582, %v1588
        %v1591 = vmul.f32 %v1589, 1.442695
        %v1592 = vpow.pop %v1591
        %v1593 = vmul.f32 %v1590, 1.442695
        %v1594 = vpow.pop %v1593
        %v1595 = vsel %vm814, %v1592, 0.0
        %1596 = vadd.xlane.f32.xlu0 %v1595
        %v1597 = vpop.xlane.xlu0 %1596
        %v1598 = vsel %vm814, %v1594, 0.0
        %1599 = vadd.xlane.f32.xlu0 %v1598
        %v1600 = vpop.xlane.xlu0 %1599
        %v1601 = vrcp.pop %v1597
        %v1602 = vrcp.pop %v1600
        %v1603 = vmul.f32 %v1592, %v1601
        %v1604 = vmul.f32 %v1594, %v1602
        %v1605 = vpack.c.bf16 %v1603, %v1603
        %v1606 = vpack.c.bf16 %v1604, %v1604
        %1607 = vrot.lane.b32.xlu0 %v809, 40
        %v1608 = vpop.permute.xlu0 %1607
        %v1610 = vsel %vm814, %v1605, 0
        %v1613 = vsel %vm942, %v1608, 0
        %1615 = vmatprep.subr.bf16.mxu0 0
        %1616 = vmatpush1.bf16.msra.mxu0 %v1613
        %1617 = vmatprep.subr.bf16.mxu0 0
        %1618 = vmatpush1.bf16.msra.mxu0 0
        %1619 = vmatprep.subr.bf16.mxu0 0
        %1620 = vmatpush1.bf16.msra.mxu0 0
        %1621 = vmatprep.subr.bf16.mxu0 0
        %1622 = vmatpush1.bf16.msra.mxu0 0
        %1623 = vmatprep.subr.bf16.mxu0 0
        %1624 = vmatpush1.bf16.msra.mxu0 0
        %1625 = vmatprep.subr.bf16.mxu0 0
        %1626 = vmatpush1.bf16.msra.mxu0 0
        %1627 = vmatprep.subr.bf16.mxu0 0
        %1628 = vmatpush1.bf16.msra.mxu0 0
        %1629 = vmatprep.subr.bf16.mxu0 0
        %1630 = vmatpush1.bf16.msra.mxu0 0
        %1631 = vmatprep.subr.bf16.mxu0 0
        %1632 = vmatpush1.bf16.msra.mxu0 0
        %1633 = vmatprep.subr.bf16.mxu0 0
        %1634 = vmatpush1.bf16.msra.mxu0 0
        %1635 = vmatprep.subr.bf16.mxu0 0
        %1636 = vmatpush1.bf16.msra.mxu0 0
        %1637 = vmatprep.subr.bf16.mxu0 0
        %1638 = vmatpush1.bf16.msra.mxu0 0
        %1639 = vmatprep.subr.bf16.mxu0 0
        %1640 = vmatpush1.bf16.msra.mxu0 0
        %1641 = vmatprep.subr.bf16.mxu0 0
        %1642 = vmatpush1.bf16.msra.mxu0 0
        %1643 = vmatprep.subr.bf16.mxu0 0
        %1644 = vmatpush1.bf16.msra.mxu0 0
        %1645 = vmatprep.subr.bf16.mxu0 0
        %1646 = vmatpush1.bf16.msra.mxu0 0
        %1647 = vmatprep.mubr.bf16.mxu0 0
        %1648 = vmatmul.mubr.bf16.gmra.mrb[0].mxu0 %v1610
        %v1649 = vpop.f32.mrb[0].mxu0
        %v1650 = vadd.f32 0.0, %v1649
        %v1651 = vpop.f32.mrb[0].mxu0
        %v1652 = vpop.f32.mrb[0].mxu0
        %v1653 = vpop.f32.mrb[0].mxu0
        %1654 = vdwg.mxu0
        %1655 = vrot.lane.b32.xlu0 %v810, 40
        %v1656 = vpop.permute.xlu0 %1655
        %v1658 = vsel %vm814, %v1606, 0
        %v1661 = vsel %vm942, %v1656, 0
        %1663 = vmatprep.subr.bf16.mxu0 0
        %1664 = vmatpush1.bf16.msra.mxu0 %v1661
        %1665 = vmatprep.subr.bf16.mxu0 0
        %1666 = vmatpush1.bf16.msra.mxu0 0
        %1667 = vmatprep.subr.bf16.mxu0 0
        %1668 = vmatpush1.bf16.msra.mxu0 0
        %1669 = vmatprep.subr.bf16.mxu0 0
        %1670 = vmatpush1.bf16.msra.mxu0 0
        %1671 = vmatprep.subr.bf16.mxu0 0
        %1672 = vmatpush1.bf16.msra.mxu0 0
        %1673 = vmatprep.subr.bf16.mxu0 0
        %1674 = vmatpush1.bf16.msra.mxu0 0
        %1675 = vmatprep.subr.bf16.mxu0 0
        %1676 = vmatpush1.bf16.msra.mxu0 0
        %1677 = vmatprep.subr.bf16.mxu0 0
        %1678 = vmatpush1.bf16.msra.mxu0 0
        %1679 = vmatprep.subr.bf16.mxu0 0
        %1680 = vmatpush1.bf16.msra.mxu0 0
        %1681 = vmatprep.subr.bf16.mxu0 0
        %1682 = vmatpush1.bf16.msra.mxu0 0
        %1683 = vmatprep.subr.bf16.mxu0 0
        %1684 = vmatpush1.bf16.msra.mxu0 0
        %1685 = vmatprep.subr.bf16.mxu0 0
        %1686 = vmatpush1.bf16.msra.mxu0 0
        %1687 = vmatprep.subr.bf16.mxu0 0
        %1688 = vmatpush1.bf16.msra.mxu0 0
        %1689 = vmatprep.subr.bf16.mxu0 0
        %1690 = vmatpush1.bf16.msra.mxu0 0
        %1691 = vmatprep.subr.bf16.mxu0 0
        %1692 = vmatpush1.bf16.msra.mxu0 0
        %1693 = vmatprep.subr.bf16.mxu0 0
        %1694 = vmatpush1.bf16.msra.mxu0 0
        %1695 = vmatprep.mubr.bf16.mxu0 0
        %1696 = vmatmul.mubr.bf16.gmra.mrb[0].mxu0 %v1658
        %v1697 = vpop.f32.mrb[0].mxu0
        %v1698 = vadd.f32 0.0, %v1697
        %v1699 = vpop.f32.mrb[0].mxu0
        %v1700 = vpop.f32.mrb[0].mxu0
        %v1701 = vpop.f32.mrb[0].mxu0
        %1702 = vdwg.mxu0
        %1705 = vrot.lane.b32.xlu0 %v1206, 8
        %v1706 = vpop.permute.xlu0 %1705
        %1707 = vrot.lane.b32.xlu0 %v1254, 8
        %v1708 = vpop.permute.xlu0 %1707
        %1713 = vrot.lane.b32.xlu0 %v1428, 16
        %v1714 = vpop.permute.xlu0 %1713
        %1715 = vrot.lane.b32.xlu0 %v1476, 16
        %v1716 = vpop.permute.xlu0 %1715
        %1721 = vrot.lane.b32.xlu0 %v1650, 24
        %v1722 = vpop.permute.xlu0 %1721
        %1723 = vrot.lane.b32.xlu0 %v1698, 24
        %v1724 = vpop.permute.xlu0 %1723
        %v1727 = vsel %vm814, %v981, %v1706
        %v1728 = vsel %vm814, %v1030, %v1708
        %vm1729 = vcmask 130048
        %v1730 = vsel %vm1729, %v1727, %v1714
        %v1731 = vsel %vm1729, %v1728, %v1716
        %vm1732 = vcmask 195584
        %v1733 = vsel %vm1732, %v1730, %v1722
        %v1734 = vsel %vm1732, %v1731, %v1724
        %v1735 = vpack.c.bf16 %v1734, %v1733
        %v1736 = vld [vmem:[%s595] sm:$0xf]
        %v1737 = vld [vmem:[%s595 + $0x4] sm:$0xf]
        %v1738 = vld [vmem:[%s595 + $0x8] sm:$0xf]
        %v1739 = vld [vmem:[%s595 + $0xc] sm:$0xf]
        %v1740 = vlaneseq
        %v1741 = vshrl.u32 %v1740, 7
        %v1742 = vsub.s32 3, %v1741
        %v1743 = vrot.slane %v716, %v1742
        %v1748 = vunpack.c.l.b16 %v1736
        %v1749 = vunpack.c.l.b16 %v1737
        %v1750 = vunpack.c.l.b16 %v1738
        %v1751 = vunpack.c.l.b16 %v1739
        %v1752 = vpack.c.b16 %v1749, %v1748
        %v1753 = vpack.c.b16 %v1751, %v1750
        %v1757 = vsel %vm734, %v1735, 0
        %1759 = vmatprep.subr.bf16.mxu0 0
        %1760 = vmatpush1.bf16.msra.mxu0 %v1752
        %1761 = vmatprep.subr.bf16.mxu0 0
        %1762 = vmatpush1.bf16.msra.mxu0 %v1753
        %1763 = vmatprep.subr.bf16.mxu0 0
        %1764 = vmatpush1.bf16.msra.mxu0 0
        %1765 = vmatprep.subr.bf16.mxu0 0
        %1766 = vmatpush1.bf16.msra.mxu0 0
        %1767 = vmatprep.subr.bf16.mxu0 0
        %1768 = vmatpush1.bf16.msra.mxu0 0
        %1769 = vmatprep.subr.bf16.mxu0 0
        %1770 = vmatpush1.bf16.msra.mxu0 0
        %1771 = vmatprep.subr.bf16.mxu0 0
        %1772 = vmatpush1.bf16.msra.mxu0 0
        %1773 = vmatprep.subr.bf16.mxu0 0
        %1774 = vmatpush1.bf16.msra.mxu0 0
        %1775 = vmatprep.subr.bf16.mxu0 0
        %1776 = vmatpush1.bf16.msra.mxu0 0
        %1777 = vmatprep.subr.bf16.mxu0 0
        %1778 = vmatpush1.bf16.msra.mxu0 0
        %1779 = vmatprep.subr.bf16.mxu0 0
        %1780 = vmatpush1.bf16.msra.mxu0 0
        %1781 = vmatprep.subr.bf16.mxu0 0
        %1782 = vmatpush1.bf16.msra.mxu0 0
        %1783 = vmatprep.subr.bf16.mxu0 0
        %1784 = vmatpush1.bf16.msra.mxu0 0
        %1785 = vmatprep.subr.bf16.mxu0 0
        %1786 = vmatpush1.bf16.msra.mxu0 0
        %1787 = vmatprep.subr.bf16.mxu0 0
        %1788 = vmatpush1.bf16.msra.mxu0 0
        %1789 = vmatprep.subr.bf16.mxu0 0
        %1790 = vmatpush1.bf16.msra.mxu0 0
        %1791 = vmatprep.mubr.bf16.mxu0 0
        %1792 = vmatmul.mubr.bf16.gmra.mrb[0].mxu0 %v1757
        %v1793 = vpop.f32.mrb[0].mxu0
        %v1794 = vadd.f32 %v1743, %v1793
        %v1795 = vpop.f32.mrb[0].mxu0
        %v1796 = vpop.f32.mrb[0].mxu0
        %v1797 = vadd.f32 %v1743, %v1796
        %v1798 = vpop.f32.mrb[0].mxu0
        %1799 = vdwg.mxu0
        %v1800 = vadd.f32 %v713, %v1794
        %v1801 = vadd.f32 %v714, %v1797
        %v1802 = vsel %vm734, %v1800, 0.0
        %1803 = vadd.xlane.f32.xlu0 %v1802
        %v1804 = vpop.xlane.xlu0 %1803
        %v1805 = vsel %vm734, %v1801, 0.0
        %1806 = vadd.xlane.f32.xlu0 %v1805
        %v1807 = vpop.xlane.xlu0 %1806
        %v1808 = vrcp.pop 32.0
        %v1809 = vmul.f32 %v1804, %v1808
        %v1810 = vmul.f32 %v1807, %v1808
        %v1811 = vsub.f32 %v1800, %v1809
        %v1812 = vsub.f32 %v1801, %v1810
        %v1813 = vmul.f32 %v1811, %v1811
        %v1814 = vmul.f32 %v1812, %v1812
        %v1815 = vsel %vm734, %v1813, 0.0
        %1816 = vadd.xlane.f32.xlu0 %v1815
        %v1817 = vpop.xlane.xlu0 %1816
        %v1818 = vsel %vm734, %v1814, 0.0
        %1819 = vadd.xlane.f32.xlu0 %v1818
        %v1820 = vpop.xlane.xlu0 %1819
        %v1821 = vmul.f32 %v1817, %v1808
        %v1822 = vmul.f32 %v1820, %v1808
        %v1823 = vadd.f32 %v1821, 1e-05
        %v1824 = vadd.f32 %v1822, 1e-05
        %v1825 = vrsqrt.pop %v1823
        %v1826 = vrsqrt.pop %v1824
        %v1827 = vmul.f32 %v1811, %v1825
        %v1828 = vmul.f32 %v1812, %v1826
        %v1829 = vlaneseq
        %v1830 = vshrl.u32 %v1829, 7
        %v1831 = vsub.s32 4, %v1830
        %v1832 = vrot.slane %v716, %v1831
        %v1833 = vmul.f32 %v1827, %v1832
        %v1834 = vmul.f32 %v1828, %v1832
        %v1835 = vlaneseq
        %v1836 = vshrl.u32 %v1835, 7
        %v1837 = vsub.s32 5, %v1836
        %v1838 = vrot.slane %v716, %v1837
        %v1839 = vadd.f32 %v1833, %v1838
        %v1840 = vadd.f32 %v1834, %v1838
        %v1841 = vpack.c.bf16 %v1840, %v1839
        %v1842 = vld [vmem:[%s600] sm:$0xf]
        %v1843 = vld [vmem:[%s600 + $0x4] sm:$0xf]
        %v1844 = vld [vmem:[%s600 + $0x8] sm:$0xf]
        %v1845 = vld [vmem:[%s600 + $0xc] sm:$0xf]
        %v1846 = vld [vmem:[%s613] sm:$0x1]
        %v1848 = vlaneseq
        %v1849 = vshrl.u32 %v1848, 7
        %v1850 = vsub.s32 0, %v1849
        %v1851 = vrot.slane %v1846, %v1850
        %v1857 = vunpack.c.l.b16 %v1842
        %v1858 = vunpack.c.l.b16 %v1843
        %v1859 = vunpack.c.l.b16 %v1844
        %v1860 = vunpack.c.l.b16 %v1845
        %v1861 = vpack.c.b16 %v1858, %v1857
        %v1862 = vpack.c.b16 %v1860, %v1859
        %v1866 = vsel %vm734, %v1841, 0
        %1868 = vmatprep.subr.bf16.mxu0 0
        %1869 = vmatpush1.bf16.msra.mxu0 %v1861
        %1870 = vmatprep.subr.bf16.mxu0 0
        %1871 = vmatpush1.bf16.msra.mxu0 %v1862
        %1872 = vmatprep.subr.bf16.mxu0 0
        %1873 = vmatpush1.bf16.msra.mxu0 0
        %1874 = vmatprep.subr.bf16.mxu0 0
        %1875 = vmatpush1.bf16.msra.mxu0 0
        %1876 = vmatprep.subr.bf16.mxu0 0
        %1877 = vmatpush1.bf16.msra.mxu0 0
        %1878 = vmatprep.subr.bf16.mxu0 0
        %1879 = vmatpush1.bf16.msra.mxu0 0
        %1880 = vmatprep.subr.bf16.mxu0 0
        %1881 = vmatpush1.bf16.msra.mxu0 0
        %1882 = vmatprep.subr.bf16.mxu0 0
        %1883 = vmatpush1.bf16.msra.mxu0 0
        %1884 = vmatprep.subr.bf16.mxu0 0
        %1885 = vmatpush1.bf16.msra.mxu0 0
        %1886 = vmatprep.subr.bf16.mxu0 0
        %1887 = vmatpush1.bf16.msra.mxu0 0
        %1888 = vmatprep.subr.bf16.mxu0 0
        %1889 = vmatpush1.bf16.msra.mxu0 0
        %1890 = vmatprep.subr.bf16.mxu0 0
        %1891 = vmatpush1.bf16.msra.mxu0 0
        %1892 = vmatprep.subr.bf16.mxu0 0
        %1893 = vmatpush1.bf16.msra.mxu0 0
        %1894 = vmatprep.subr.bf16.mxu0 0
        %1895 = vmatpush1.bf16.msra.mxu0 0
        %1896 = vmatprep.subr.bf16.mxu0 0
        %1897 = vmatpush1.bf16.msra.mxu0 0
        %1898 = vmatprep.subr.bf16.mxu0 0
        %1899 = vmatpush1.bf16.msra.mxu0 0
        %1900 = vmatprep.mubr.bf16.mxu0 0
        %1901 = vmatmul.mubr.bf16.gmra.mrb[0].mxu0 %v1866
        %v1902 = vpop.f32.mrb[0].mxu0
        %v1903 = vadd.f32 %v1851, %v1902
        %v1904 = vpop.f32.mrb[0].mxu0
        %v1905 = vpop.f32.mrb[0].mxu0
        %v1906 = vadd.f32 %v1851, %v1905
        %v1907 = vpop.f32.mrb[0].mxu0
        %1908 = vdwg.mxu0
        %v1909 = vmul.f32 %v1903, 0.5
        %v1910 = vmul.f32 %v1906, 0.5
        %v1911 = vmul.f32 %v1903, 0.70710677
        %v1912 = vmul.f32 %v1906, 0.70710677
        %v1913 = verf.f32.pop %v1911
        %v1914 = verf.f32.pop %v1912
        %v1915 = vadd.f32 %v1913, 1.0
        %v1916 = vadd.f32 %v1914, 1.0
        %v1917 = vmul.f32 %v1909, %v1915
        %v1918 = vmul.f32 %v1910, %v1916
        %v1919 = vpack.c.bf16 %v1918, %v1917
        %v1920 = vld [vmem:[%s605] sm:$0xf]
        %v1921 = vld [vmem:[%s605 + $0x4] sm:$0xf]
        %v1922 = vld [vmem:[%s605 + $0x8] sm:$0xf]
        %v1923 = vld [vmem:[%s605 + $0xc] sm:$0xf]
        %v1924 = vld [vmem:[%s605 + $0x10] sm:$0xf]
        %v1925 = vld [vmem:[%s605 + $0x14] sm:$0xf]
        %v1926 = vld [vmem:[%s605 + $0x18] sm:$0xf]
        %v1927 = vld [vmem:[%s605 + $0x1c] sm:$0xf]
        %v1928 = vld [vmem:[%s605 + $0x20] sm:$0xf]
        %v1929 = vld [vmem:[%s605 + $0x24] sm:$0xf]
        %v1930 = vld [vmem:[%s605 + $0x28] sm:$0xf]
        %v1931 = vld [vmem:[%s605 + $0x2c] sm:$0xf]
        %v1932 = vld [vmem:[%s605 + $0x30] sm:$0xf]
        %v1933 = vld [vmem:[%s605 + $0x34] sm:$0xf]
        %v1934 = vld [vmem:[%s605 + $0x38] sm:$0xf]
        %v1935 = vld [vmem:[%s605 + $0x3c] sm:$0xf]
        %v1936 = vlaneseq
        %v1937 = vshrl.u32 %v1936, 7
        %v1938 = vsub.s32 6, %v1937
        %v1939 = vrot.slane %v716, %v1938
        %v1956 = vunpack.c.l.b16 %v1920
        %v1957 = vunpack.c.l.b16 %v1921
        %v1958 = vunpack.c.l.b16 %v1922
        %v1959 = vunpack.c.l.b16 %v1923
        %v1960 = vunpack.c.l.b16 %v1924
        %v1961 = vunpack.c.l.b16 %v1925
        %v1962 = vunpack.c.l.b16 %v1926
        %v1963 = vunpack.c.l.b16 %v1927
        %v1964 = vunpack.c.l.b16 %v1928
        %v1965 = vunpack.c.l.b16 %v1929
        %v1966 = vunpack.c.l.b16 %v1930
        %v1967 = vunpack.c.l.b16 %v1931
        %v1968 = vunpack.c.l.b16 %v1932
        %v1969 = vunpack.c.l.b16 %v1933
        %v1970 = vunpack.c.l.b16 %v1934
        %v1971 = vunpack.c.l.b16 %v1935
        %v1972 = vpack.c.b16 %v1957, %v1956
        %v1973 = vpack.c.b16 %v1959, %v1958
        %v1974 = vpack.c.b16 %v1961, %v1960
        %v1975 = vpack.c.b16 %v1963, %v1962
        %v1976 = vpack.c.b16 %v1965, %v1964
        %v1977 = vpack.c.b16 %v1967, %v1966
        %v1978 = vpack.c.b16 %v1969, %v1968
        %v1979 = vpack.c.b16 %v1971, %v1970
        %1988 = vmatprep.subr.bf16.mxu0 0
        %1989 = vmatpush1.bf16.msra.mxu0 %v1972
        %1990 = vmatprep.subr.bf16.mxu0 0
        %1991 = vmatpush1.bf16.msra.mxu0 %v1973
        %1992 = vmatprep.subr.bf16.mxu0 0
        %1993 = vmatpush1.bf16.msra.mxu0 %v1974
        %1994 = vmatprep.subr.bf16.mxu0 0
        %1995 = vmatpush1.bf16.msra.mxu0 %v1975
        %1996 = vmatprep.subr.bf16.mxu0 0
        %1997 = vmatpush1.bf16.msra.mxu0 %v1976
        %1998 = vmatprep.subr.bf16.mxu0 0
        %1999 = vmatpush1.bf16.msra.mxu0 %v1977
        %2000 = vmatprep.subr.bf16.mxu0 0
        %2001 = vmatpush1.bf16.msra.mxu0 %v1978
        %2002 = vmatprep.subr.bf16.mxu0 0
        %2003 = vmatpush1.bf16.msra.mxu0 %v1979
        %2004 = vmatprep.subr.bf16.mxu0 0
        %2005 = vmatpush1.bf16.msra.mxu0 0
        %2006 = vmatprep.subr.bf16.mxu0 0
        %2007 = vmatpush1.bf16.msra.mxu0 0
        %2008 = vmatprep.subr.bf16.mxu0 0
        %2009 = vmatpush1.bf16.msra.mxu0 0
        %2010 = vmatprep.subr.bf16.mxu0 0
        %2011 = vmatpush1.bf16.msra.mxu0 0
        %2012 = vmatprep.subr.bf16.mxu0 0
        %2013 = vmatpush1.bf16.msra.mxu0 0
        %2014 = vmatprep.subr.bf16.mxu0 0
        %2015 = vmatpush1.bf16.msra.mxu0 0
        %2016 = vmatprep.subr.bf16.mxu0 0
        %2017 = vmatpush1.bf16.msra.mxu0 0
        %2018 = vmatprep.subr.bf16.mxu0 0
        %2019 = vmatpush1.bf16.msra.mxu0 0
        %2020 = vmatprep.mubr.bf16.mxu0 0
        %2021 = vmatmul.mubr.bf16.gmra.mrb[0].mxu0 %v1919
        %v2022 = vpop.f32.mrb[0].mxu0
        %v2023 = vadd.f32 %v1939, %v2022
        %v2024 = vpop.f32.mrb[0].mxu0
        %v2025 = vpop.f32.mrb[0].mxu0
        %v2026 = vadd.f32 %v1939, %v2025
        %v2027 = vpop.f32.mrb[0].mxu0
        %2028 = vdwg.mxu0
        %v2029 = vadd.f32 %v1839, %v2023
        %v2030 = vadd.f32 %v1840, %v2026
        %v2031 = vsel %vm734, %v2029, 0.0
        %2032 = vadd.xlane.f32.xlu0 %v2031
        %v2033 = vpop.xlane.xlu0 %2032
        %v2034 = vsel %vm734, %v2030, 0.0
        %2035 = vadd.xlane.f32.xlu0 %v2034
        %v2036 = vpop.xlane.xlu0 %2035
        %v2037 = vmul.f32 %v2033, %v1808
        %v2038 = vmul.f32 %v2036, %v1808
        %v2039 = vsub.f32 %v2029, %v2037
        %v2040 = vsub.f32 %v2030, %v2038
        %v2041 = vmul.f32 %v2039, %v2039
        %v2042 = vmul.f32 %v2040, %v2040
        %v2043 = vsel %vm734, %v2041, 0.0
        %2044 = vadd.xlane.f32.xlu0 %v2043
        %v2045 = vpop.xlane.xlu0 %2044
        %v2046 = vsel %vm734, %v2042, 0.0
        %2047 = vadd.xlane.f32.xlu0 %v2046
        %v2048 = vpop.xlane.xlu0 %2047
        %v2049 = vmul.f32 %v2045, %v1808
        %v2050 = vmul.f32 %v2048, %v1808
        %v2051 = vadd.f32 %v2049, 1e-05
        %v2052 = vadd.f32 %v2050, 1e-05
        %v2053 = vrsqrt.pop %v2051
        %v2054 = vrsqrt.pop %v2052
        %v2055 = vmul.f32 %v2039, %v2053
        %v2056 = vmul.f32 %v2040, %v2054
        %v2057 = vlaneseq
        %v2058 = vshrl.u32 %v2057, 7
        %v2059 = vsub.s32 7, %v2058
        %v2060 = vrot.slane %v716, %v2059
        %v2061 = vmul.f32 %v2055, %v2060
        %v2062 = vmul.f32 %v2056, %v2060
        %v2063 = vlaneseq
        %v2064 = vshrl.u32 %v2063, 7
        %v2065 = vsub.s32 0, %v2064
        %v2066 = vrot.slane %v717, %v2065
        %v2067 = vadd.f32 %v2061, %v2066
        %v2068 = vadd.f32 %v2062, %v2066
        %2069 = vst.msk [vmem:[#allocation2] sm:$0xff] %vm734, %v2067
        %2070 = vst.msk [vmem:[#allocation2 + $0x8] sm:$0xff] %vm734, %v2068
        %p2071 = scmp.eq.s32.totalorder %s32, 1
        // Predicated region
        $region85: #{tpu_custom_call.1} parent=79 // pred_check
          %p2072 = pneg %p2071
        $region86: #{tpu_custom_call.1} parent=79 // pred_check_branch
          %2074 = sbr.rel (%p2072) target = $region88
        $region87: #{tpu_custom_call.1} parent=79 // pred_region
          %v2075 = vld [vmem:[%s9] sm:$0x1]
          %v2076 = vld [vmem:[%s10] sm:$0x1]
          %v2079 = vrot.slane %v2068, 7
          %vm2082 = vcmask 261127
          %v2083 = vsel %vm2082, %v2067, 0.0
          %2084 = vadd.xlane.f32.xlu0 %v2083
          %v2085 = vpop.xlane.xlu0 %2084
          %vm2086 = vcmask 253952
          %v2087 = vsel %vm2086, %v2079, 0.0
          %2088 = vadd.xlane.f32.xlu0 %v2087
          %v2089 = vpop.xlane.xlu0 %2088
          %v2090 = vmul.f32 %v2085, %v1808
          %v2091 = vmul.f32 %v2089, %v1808
          %v2094 = vrot.slane %v2091, 1
          %v2097 = vsub.f32 %v2067, %v2090
          %v2098 = vsub.f32 %v2068, %v2094
          %v2099 = vmul.f32 %v2097, %v2097
          %v2100 = vmul.f32 %v2098, %v2098
          %v2103 = vrot.slane %v2100, 7
          %v2106 = vsel %vm2082, %v2099, 0.0
          %2107 = vadd.xlane.f32.xlu0 %v2106
          %v2108 = vpop.xlane.xlu0 %2107
          %v2109 = vsel %vm2086, %v2103, 0.0
          %2110 = vadd.xlane.f32.xlu0 %v2109
          %v2111 = vpop.xlane.xlu0 %2110
          %v2112 = vmul.f32 %v2108, %v1808
          %v2113 = vmul.f32 %v2111, %v1808
          %v2114 = vadd.f32 %v2112, 1e-05
          %v2115 = vadd.f32 %v2113, 1e-05
          %v2116 = vrsqrt.pop %v2114
          %v2117 = vrsqrt.pop %v2115
          %v2120 = vrot.slane %v2117, 1
          %v2123 = vmul.f32 %v2097, %v2116
          %v2124 = vmul.f32 %v2098, %v2120
          %v2126 = vlaneseq
          %v2127 = vshrl.u32 %v2126, 7
          %v2128 = vsub.s32 0, %v2127
          %v2129 = vrot.slane %v2075, %v2128
          %v2131 = vmul.f32 %v2123, %v2129
          %v2132 = vmul.f32 %v2124, %v2129
          %v2134 = vlaneseq
          %v2135 = vshrl.u32 %v2134, 7
          %v2136 = vsub.s32 0, %v2135
          %v2137 = vrot.slane %v2076, %v2136
          %v2139 = vadd.f32 %v2131, %v2137
          %v2140 = vadd.f32 %v2132, %v2137
          %v2141 = vld [vmem:[%s11] sm:$0x1]
          %v2142 = vld [vmem:[%s12] sm:$0x1]
          %v2145 = vrot.slane %v2140, 7
          %v2148 = vsel %vm2082, %v2139, 0.0
          %2149 = vadd.xlane.f32.xlu0 %v2148
          %v2150 = vpop.xlane.xlu0 %2149
          %v2151 = vsel %vm2086, %v2145, 0.0
          %2152 = vadd.xlane.f32.xlu0 %v2151
          %v2153 = vpop.xlane.xlu0 %2152
          %v2154 = vmul.f32 %v2150, %v1808
          %v2155 = vmul.f32 %v2153, %v1808
          %v2158 = vrot.slane %v2155, 1
          %v2161 = vsub.f32 %v2139, %v2154
          %v2162 = vsub.f32 %v2140, %v2158
          %v2163 = vmul.f32 %v2161, %v2161
          %v2164 = vmul.f32 %v2162, %v2162
          %v2167 = vrot.slane %v2164, 7
          %v2170 = vsel %vm2082, %v2163, 0.0
          %2171 = vadd.xlane.f32.xlu0 %v2170
          %v2172 = vpop.xlane.xlu0 %2171
          %v2173 = vsel %vm2086, %v2167, 0.0
          %2174 = vadd.xlane.f32.xlu0 %v2173
          %v2175 = vpop.xlane.xlu0 %2174
          %v2176 = vmul.f32 %v2172, %v1808
          %v2177 = vmul.f32 %v2175, %v1808
          %v2178 = vadd.f32 %v2176, 1e-05
          %v2179 = vadd.f32 %v2177, 1e-05
          %v2180 = vrsqrt.pop %v2178
          %v2181 = vrsqrt.pop %v2179
          %v2184 = vrot.slane %v2181, 1
          %v2187 = vmul.f32 %v2161, %v2180
          %v2188 = vmul.f32 %v2162, %v2184
          %v2190 = vlaneseq
          %v2191 = vshrl.u32 %v2190, 7
          %v2192 = vsub.s32 0, %v2191
          %v2193 = vrot.slane %v2141, %v2192
          %v2195 = vmul.f32 %v2187, %v2193
          %v2196 = vmul.f32 %v2188, %v2193
          %v2198 = vlaneseq
          %v2199 = vshrl.u32 %v2198, 7
          %v2200 = vsub.s32 0, %v2199
          %v2201 = vrot.slane %v2142, %v2200
          %v2203 = vadd.f32 %v2195, %v2201
          %v2204 = vadd.f32 %v2196, %v2201
          %v2205 = vld [vmem:[%s13] sm:$0xff]
          %v2206 = vld [vmem:[%s13 + $0x8] sm:$0xff]
          %v2207 = vld [vmem:[%s13 + $0x10] sm:$0xff]
          %v2208 = vld [vmem:[%s13 + $0x18] sm:$0xff]
          %v2209 = vld [vmem:[%s14] sm:$0x1]
          %v2211 = vlaneseq
          %v2212 = vshrl.u32 %v2211, 7
          %v2213 = vsub.s32 0, %v2212
          %v2214 = vrot.slane %v2209, %v2213
          %v2218 = vrot.slane %v2203, 7
          %v2219 = vrot.slane %v2204, 6
          %vm2220 = vcmask 1041409
          %v2221 = vsel %vm2220, %v2219, %v2218
          %v2222 = vsel %vm734, %v2221, 0
          %2224 = vmatprep.subr.mxu0 0.0
          %2225 = vmatpush1.msra.mxu0 %v2205
          %2226 = vmatprep.subr.mxu0 0.0
          %2227 = vmatpush1.msra.mxu0 %v2206
          %2228 = vmatprep.subr.mxu0 0.0
          %2229 = vmatpush1.msra.mxu0 %v2207
          %2230 = vmatprep.subr.mxu0 0.0
          %2231 = vmatpush1.msra.mxu0 %v2208
          %2232 = vmatprep.subr.mxu0 0.0
          %2233 = vmatpush1.msra.mxu0 0.0
          %2234 = vmatprep.subr.mxu0 0.0
          %2235 = vmatpush1.msra.mxu0 0.0
          %2236 = vmatprep.subr.mxu0 0.0
          %2237 = vmatpush1.msra.mxu0 0.0
          %2238 = vmatprep.subr.mxu0 0.0
          %2239 = vmatpush1.msra.mxu0 0.0
          %2240 = vmatprep.subr.mxu0 0.0
          %2241 = vmatpush1.msra.mxu0 0.0
          %2242 = vmatprep.subr.mxu0 0.0
          %2243 = vmatpush1.msra.mxu0 0.0
          %2244 = vmatprep.subr.mxu0 0.0
          %2245 = vmatpush1.msra.mxu0 0.0
          %2246 = vmatprep.subr.mxu0 0.0
          %2247 = vmatpush1.msra.mxu0 0.0
          %2248 = vmatprep.subr.mxu0 0.0
          %2249 = vmatpush1.msra.mxu0 0.0
          %2250 = vmatprep.subr.mxu0 0.0
          %2251 = vmatpush1.msra.mxu0 0.0
          %2252 = vmatprep.subr.mxu0 0.0
          %2253 = vmatpush1.msra.mxu0 0.0
          %2254 = vmatprep.subr.mxu0 0.0
          %2255 = vmatpush1.msra.mxu0 0.0
          %2256 = vmatprep.subr.mxu0 0.0
          %2257 = vmatpush1.msra.mxu0 0.0
          %2258 = vmatprep.subr.mxu0 0.0
          %2259 = vmatpush1.msra.mxu0 0.0
          %2260 = vmatprep.subr.mxu0 0.0
          %2261 = vmatpush1.msra.mxu0 0.0
          %2262 = vmatprep.subr.mxu0 0.0
          %2263 = vmatpush1.msra.mxu0 0.0
          %2264 = vmatprep.subr.mxu0 0.0
          %2265 = vmatpush1.msra.mxu0 0.0
          %2266 = vmatprep.subr.mxu0 0.0
          %2267 = vmatpush1.msra.mxu0 0.0
          %2268 = vmatprep.subr.mxu0 0.0
          %2269 = vmatpush1.msra.mxu0 0.0
          %2270 = vmatprep.subr.mxu0 0.0
          %2271 = vmatpush1.msra.mxu0 0.0
          %2272 = vmatprep.subr.mxu0 0.0
          %2273 = vmatpush1.msra.mxu0 0.0
          %2274 = vmatprep.subr.mxu0 0.0
          %2275 = vmatpush1.msra.mxu0 0.0
          %2276 = vmatprep.subr.mxu0 0.0
          %2277 = vmatpush1.msra.mxu0 0.0
          %2278 = vmatprep.subr.mxu0 0.0
          %2279 = vmatpush1.msra.mxu0 0.0
          %2280 = vmatprep.subr.mxu0 0.0
          %2281 = vmatpush1.msra.mxu0 0.0
          %2282 = vmatprep.subr.mxu0 0.0
          %2283 = vmatpush1.msra.mxu0 0.0
          %2284 = vmatprep.subr.mxu0 0.0
          %2285 = vmatpush1.msra.mxu0 0.0
          %2286 = vmatprep.subr.mxu0 0.0
          %2287 = vmatpush1.msra.mxu0 0.0
          %2288 = vmatprep.mubr.f32.mxu0 0.0
          %2289 = vmatmul.mubr.f32.gmra.mrb[0].mxu0 %v2222
          %v2290 = vpop.f32.mrb[0].mxu0
          %v2291 = vadd.f32 %v2214, %v2290
          %v2292 = vpop.f32.mrb[0].mxu0
          %2293 = vdwg.mxu0
          %vm2294 = vcmask 58368
          %2295 = vst.msk [vmem:[#allocation3] sm:$0x3] %vm2294, %v2291
        $region88: #{tpu_custom_call.1} parent=79 // pred_fallthru
          _
        // Predicated region
        $region89: #{tpu_custom_call.1} parent=79 // pred_check
          %p2296 = pneg %p407
        $region90: #{tpu_custom_call.1} parent=79 // pred_check_branch
          %2298 = sbr.rel (%p2296) target = $region92
        $region91: #{tpu_custom_call.1} parent=79 // pred_region
          %s2300 = ssub.s32 32, 32
          %2301 = vsyncadd [#allocation4], %s2300
          %s2302 = smul.addr %s31, 32
          %s2303 = scalar_lea.hbm %s15, %s2302
          %s2305 = sshll.u32 [#allocation3], 4
          %s2306 = int_to_ptr.vmem [resolvable:$true] %s2305
          %2308 = dma.vmem_to_hbm [thread:$0]  %s2306, 32, %s2303, [#allocation4]
        $region92: #{tpu_custom_call.1} parent=79 // pred_fallthru
          _
        // Predicated region
        $region93: #{tpu_custom_call.1} parent=79 // pred_check
          %p2309 = pneg %p407
        $region94: #{tpu_custom_call.1} parent=79 // pred_check_branch
          %2311 = sbr.rel (%p2309) target = $region96
        $region95: #{tpu_custom_call.1} parent=79 // pred_region
          %2312 = dma.done [#allocation4], 32
        $region96: #{tpu_custom_call.1} parent=79 // pred_fallthru
          _
      $region80: #{tpu_custom_call.1} parent=5 // pred_fallthru
        _
      %p2313 = scmp.le.s32.totalorder 2, %s22
      // Predicated region
      $region97: #{tpu_custom_call.1} parent=5 // pred_check
        %p2314 = pneg %p2313
      $region98: #{tpu_custom_call.1} parent=5 // pred_check_branch
        %2316 = sbr.rel (%p2314) target = $region100
      $region99: #{tpu_custom_call.1} parent=5 // pred_region
        %s2317 = ssub.s32 %s22, 2
      $region100: #{tpu_custom_call.1} parent=5 // pred_fallthru
        _
    $region6: #{tpu_custom_call.1} parent=1 // loop_footer
      %s26 = sadd.s32 1, %s22
    $region7: #{tpu_custom_call.1} parent=1 // loop_footer_branch
      %21 = sbr.rel target = $region3
    $region8: #{tpu_custom_call.1} parent=1 // loop_exit
      _
    %2318 = vsyncpa [#allocation4], 1
    %s2319 = scalar_lea.sflag [#allocation4], 1
    %2320 = vsyncpa %s2319, 1

</llo_original>
